<compile_context>
chip_gen: v5e
topology: v5e:2x2
jax: 0.10.0
libtpu: 0.0.40
codegen_flags: <defaults>
</compile_context>

<pallas_src>
import math
import functools

import jax
import jax.numpy as jnp
from jax.experimental import pallas as pl
from jax.experimental.pallas import tpu as pltpu


# ----------------------------------------------------------------------------
# Fused kernel: n_layers x TransformerEncoderLayer + masked average pool
# ----------------------------------------------------------------------------
def _fused_encoder_kernel(n_heads, ln_eps,
                          x0_ref, negbias_ref, wpool_ref,
                          wqkv_ref, bqkv_ref, wo_ref, w1_ref, b1_ref, w2_ref,
                          vecs_ref,
                          out_ref,
                          x_vmem):
    layer = pl.program_id(0)
    n_layers = pl.num_programs(0)
    B, S, D = x0_ref.shape
    dh = D // n_heads

    # --- step 0: stash the (pos-encoded) activation in VMEM ------------------
    @pl.when(layer == 0)
    def _():
        x_vmem[...] = x0_ref[...].reshape(B * S, D).astype(jnp.float32)

    neg_bias = negbias_ref[...][:, None, :]            # (B, 1, S) additive key bias

    vecs = vecs_ref[0]                                  # (6, D) f32 packed vectors
    bo, b2 = vecs[0:1, :], vecs[1:2, :]
    g1, be1 = vecs[2:3, :], vecs[3:4, :]
    g2, be2 = vecs[4:5, :], vecs[5:6, :]

    x = x_vmem[...]                                     # (B*S, D) f32 residual stream
    xb = x.astype(jnp.bfloat16)

    # --- fused QKV projection: one MXU slab over the whole batch -------------
    # (1/sqrt(dh) is already folded into the q columns of wqkv/bqkv.)
    qkv = jnp.dot(xb, wqkv_ref[0], preferred_element_type=jnp.float32) + bqkv_ref[0]
    qkv = qkv.reshape(B, S, 3 * D)                      # S is 8-aligned: free reshape
    q = qkv[:, :, 0:D].astype(jnp.bfloat16)
    k = qkv[:, :, D:2 * D].astype(jnp.bfloat16)
    v = qkv[:, :, 2 * D:3 * D].astype(jnp.bfloat16)

    # --- multi-head attention: batched over B, heads unrolled ----------------
    # TODO(synk): a head-batched 'bqhd,bkhd->bhqk' dot_general (2 batch dims)
    # would avoid the per-head lane slices + concat, but Mosaic's documented
    # dot_general support is single-leading-batch-dim 3D, so we keep the
    # known-lowering per-head loop with static slices.
    heads = []
    for h in range(n_heads):
        qh = q[:, :, h * dh:(h + 1) * dh]
        kh = k[:, :, h * dh:(h + 1) * dh]
        vh = v[:, :, h * dh:(h + 1) * dh]
        s = jnp.einsum('bqd,bkd->bqk', qh, kh,
                       preferred_element_type=jnp.float32) + neg_bias
        smax = jnp.max(s, axis=-1, keepdims=True)
        p = jnp.exp(s - smax)
        p = p * pl.reciprocal(jnp.sum(p, axis=-1, keepdims=True), approx=True)
        heads.append(jnp.einsum('bqk,bkd->bqd', p.astype(jnp.bfloat16), vh,
                                preferred_element_type=jnp.float32))
    attn = jnp.concatenate(heads, axis=-1).reshape(B * S, D)
    attn = jnp.dot(attn.astype(jnp.bfloat16), wo_ref[0],
                   preferred_element_type=jnp.float32) + bo

    # --- residual + LayerNorm 1 (dropout = identity, eval) -------------------
    x1 = x + attn
    mu1 = jnp.mean(x1, axis=-1, keepdims=True)
    xc1 = x1 - mu1
    var1 = jnp.mean(xc1 * xc1, axis=-1, keepdims=True)
    y1 = xc1 * jax.lax.rsqrt(var1 + ln_eps) * g1 + be1

    # --- feed-forward (ReLU) --------------------------------------------------
    h1 = jnp.dot(y1.astype(jnp.bfloat16), w1_ref[0],
                 preferred_element_type=jnp.float32) + b1_ref[0]
    h1 = jnp.maximum(h1, 0.0)
    h2 = jnp.dot(h1.astype(jnp.bfloat16), w2_ref[0],
                 preferred_element_type=jnp.float32) + b2

    # --- residual + LayerNorm 2 -----------------------------------------------
    x2 = y1 + h2
    mu2 = jnp.mean(x2, axis=-1, keepdims=True)
    xc2 = x2 - mu2
    var2 = jnp.mean(xc2 * xc2, axis=-1, keepdims=True)
    y2 = xc2 * jax.lax.rsqrt(var2 + ln_eps) * g2 + be2

    x_vmem[...] = y2                                    # carry to next layer

    # --- last layer: masked average pool (AvgPoolSequence) -------------------
    @pl.when(layer == n_layers - 1)
    def _():
        pooled = jnp.sum(y2.reshape(B, S, D) * wpool_ref[...][:, :, None], axis=1)
        out_ref[...] = pooled.astype(out_ref.dtype)


# ----------------------------------------------------------------------------
# Wrapper
# ----------------------------------------------------------------------------
def single_transformer_encoder(feat, ignore_mask, params, n_heads, ln_eps=1e-5):
    """feat: [B, S, D] float32, ignore_mask: [B, S] bool (True = padded)."""
    B, S, D = feat.shape
    layers = params["layers"]
    L = len(layers)
    F = layers[0]["w1"].shape[1]
    assert D % n_heads == 0
    dh = D // n_heads
    scale = 1.0 / math.sqrt(dh)
    assert S <= params["pos"].shape[0], "sequence longer than learned pos table"
    bf16 = jnp.bfloat16

    # Positional encoding pre-added in the wrapper (frees VMEM + one DMA input).
    x0 = feat.astype(jnp.float32) + params["pos"][:S][None]

    # Pad S to a multiple of 8 so per-layer reshapes stay (8,128)-tile aligned.
    # Padded positions are fully masked (bias=-1e30, pool weight 0).
    Sp = ((S + 7) // 8) * 8
    if Sp != S:
        x0 = jnp.pad(x0, ((0, 0), (0, Sp - S), (0, 0)))
        ignore_mask = jnp.pad(ignore_mask, ((0, 0), (0, Sp - S)),
                              constant_values=True)

    # Precompute (once) the additive key-padding bias and the pooling weights.
    ignore_f = ignore_mask.astype(jnp.float32)                        # (B, Sp)
    neg_bias = jnp.where(ignore_mask, -1e30, 0.0).astype(jnp.float32)  # (B, Sp)
    keep = 1.0 - ignore_f
    length = jnp.sum(keep, axis=-1, keepdims=True)
    # TODO(synk): a fully-masked row gives weight ~0 everywhere (PyTorch's MHA
    # would produce NaN on that edge case); behavior intentionally kept finite.
    w_pool = keep * (1.0 / (length + 1e-12))                           # (B, Sp)

    # Stack per-layer weights on a leading layer axis; matmul weights pre-cast
    # to bf16 (halves weight DMA); 1/sqrt(dh) folded into the q columns.
    wqkv = jnp.stack([jnp.concatenate([lp["wq"] * scale, lp["wk"], lp["wv"]],
                                      axis=1)
                      for lp in layers]).astype(bf16)                 # (L, D, 3D)
    bqkv = jnp.stack([jnp.concatenate([lp["bq"] * scale, lp["bk"], lp["bv"]],
                                      axis=1)
                      for lp in layers])                              # (L, 1, 3D)
    wo = jnp.stack([lp["wo"] for lp in layers]).astype(bf16)          # (L, D, D)
    w1 = jnp.stack([lp["w1"] for lp in layers]).astype(bf16)          # (L, D, F)
    b1 = jnp.stack([lp["b1"] for lp in layers])                       # (L, 1, F)
    w2 = jnp.stack([lp["w2"] for lp in layers]).astype(bf16)          # (L, F, D)
    vecs = jnp.stack([jnp.concatenate([lp["bo"], lp["b2"],
                                       lp["ln1_g"], lp["ln1_b"],
                                       lp["ln2_g"], lp["ln2_b"]], axis=0)
                      for lp in layers])                              # (L, 6, D)

    kernel = functools.partial(_fused_encoder_kernel, n_heads, ln_eps)

    in_specs = [
        pl.BlockSpec((B, Sp, D), lambda l: (0, 0, 0)),       # pos-encoded input
        pl.BlockSpec((B, Sp), lambda l: (0, 0)),             # additive key bias
        pl.BlockSpec((B, Sp), lambda l: (0, 0)),             # pooling weights
        pl.BlockSpec((1, D, 3 * D), lambda l: (l, 0, 0)),    # wqkv   (per layer)
        pl.BlockSpec((1, 1, 3 * D), lambda l: (l, 0, 0)),    # bqkv
        pl.BlockSpec((1, D, D), lambda l: (l, 0, 0)),        # wo
        pl.BlockSpec((1, D, F), lambda l: (l, 0, 0)),        # w1
        pl.BlockSpec((1, 1, F), lambda l: (l, 0, 0)),        # b1
        pl.BlockSpec((1, F, D), lambda l: (l, 0, 0)),        # w2
        pl.BlockSpec((1, 6, D), lambda l: (l, 0, 0)),        # packed bo/b2/LN params
    ]

    # VMEM budget: ~3/4 of the detected part's physical VMEM (48 MiB on v7x's
    # 64 MiB, ~96 MiB on v5e/v6e's 128 MiB), capped at 110 MiB.
    try:
        vmem_cap = int(pltpu.get_tpu_info().vmem_capacity_bytes)
    except Exception:
        vmem_cap = 64 * 1024 * 1024
    vmem_limit = int(min(vmem_cap * 3 // 4, 110 * 1024 * 1024))

    # TODO(synk): for large B on v7x, add a leading "parallel" batch-block grid
    # axis so the second TensorCore is used (neutral/negative at tiny B because
    # each core would re-stream all layer weights).
    # TODO(synk): on v5e/v6e the extra VMEM headroom could also back
    # pipeline_mode=pl.Buffered(3) on the weight specs / int8 weights.
    return pl.pallas_call(
        kernel,
        out_shape=jax.ShapeDtypeStruct((B, D), feat.dtype),
        grid_spec=pltpu.PrefetchScalarGridSpec(
            num_scalar_prefetch=0,
            grid=(L,),
            in_specs=in_specs,
            out_specs=pl.BlockSpec((B, D), lambda l: (0, 0)),
            scratch_shapes=[pltpu.VMEM((B * Sp, D), jnp.float32)],
        ),
        compiler_params=pltpu.CompilerParams(
            dimension_semantics=("arbitrary",),       # layers are sequential
            vmem_limit_bytes=vmem_limit,
        ),
    )(x0, neg_bias, w_pool, wqkv, bqkv, wo, w1, b1, w2, vecs)


# ----------------------------------------------------------------------------
# Deterministic parameter init (shapes from the PyTorch module __init__)
# ----------------------------------------------------------------------------
def init_params(key, dim, n_layers, dim_ff=2048, num_embeddings=50):
    def xavier(k, shape):
        std = math.sqrt(2.0 / (shape[0] + shape[1]))
        return (jax.random.normal(k, shape, jnp.float32) * std).astype(jnp.float32)

    keys = jax.random.split(key, 1 + n_layers)
    params = {"pos": xavier(keys[0], (num_embeddings, dim)), "layers": []}
    for l in range(n_layers):
        ks = jax.random.split(keys[1 + l], 12)
        layer = {
            "wq": xavier(ks[0], (dim, dim)),
            "bq": jax.random.normal(ks[1], (1, dim), jnp.float32) * 0.02,
            "wk": xavier(ks[2], (dim, dim)),
            "bk": jax.random.normal(ks[3], (1, dim), jnp.float32) * 0.02,
            "wv": xavier(ks[4], (dim, dim)),
            "bv": jax.random.normal(ks[5], (1, dim), jnp.float32) * 0.02,
            "wo": xavier(ks[6], (dim, dim)),
            "bo": jax.random.normal(ks[7], (1, dim), jnp.float32) * 0.02,
            "w1": xavier(ks[8], (dim, dim_ff)),
            "b1": jax.random.normal(ks[9], (1, dim_ff), jnp.float32) * 0.02,
            "w2": xavier(ks[10], (dim_ff, dim)),
            "b2": jax.random.normal(ks[11], (1, dim), jnp.float32) * 0.02,
            "ln1_g": jnp.ones((1, dim), jnp.float32),
            "ln1_b": jnp.zeros((1, dim), jnp.float32),
            "ln2_g": jnp.ones((1, dim), jnp.float32),
            "ln2_b": jnp.zeros((1, dim), jnp.float32),
        }
        params["layers"].append(layer)
    return params


# ----------------------------------------------------------------------------
if __name__ == "__main__":
    dim, n_heads, n_layers = 32, 4, 2
    B, S = 2, 8
    dim_ff = 64   # small FFN width for the smoke test

    key = jax.random.PRNGKey(0)
    kp, kx = jax.random.split(key)
    params = init_params(kp, dim, n_layers, dim_ff=dim_ff)

    feat = jax.random.normal(kx, (B, S, dim), jnp.float32)
    # src_key_padding_mask convention: True = ignore/padded position.
    ignore_mask = jnp.array(
        [[False] * S,
         [False] * 5 + [True] * (S - 5)], dtype=jnp.bool_)

    # TODO(synk): dropout layers (pos-encoder & encoder-layer) are inference-mode
    # identities; stochastic training-mode dropout is not reproduced.
    out = single_transformer_encoder(feat, ignore_mask, params, n_heads)
    out = jax.block_until_ready(out)

    assert out.shape == (B, dim), out.shape
    assert bool(jnp.all(jnp.isfinite(out)))
    print("KERNEL_OK")
</pallas_src>

<mosaic_0001>
module attributes {stable_mosaic.version = 11 : i64} {
  func.func @_fused_encoder_kernel(%arg0: i32, %arg1: memref<2x8x32xf32, #tpu.memory_space<vmem>>, %arg2: memref<2x8xf32, #tpu.memory_space<vmem>>, %arg3: memref<2x8xf32, #tpu.memory_space<vmem>>, %arg4: memref<1x32x96xbf16, #tpu.memory_space<vmem>>, %arg5: memref<1x1x96xf32, #tpu.memory_space<vmem>>, %arg6: memref<1x32x32xbf16, #tpu.memory_space<vmem>>, %arg7: memref<1x32x64xbf16, #tpu.memory_space<vmem>>, %arg8: memref<1x1x64xf32, #tpu.memory_space<vmem>>, %arg9: memref<1x64x32xbf16, #tpu.memory_space<vmem>>, %arg10: memref<1x6x32xf32, #tpu.memory_space<vmem>>, %arg11: memref<2x32xf32, #tpu.memory_space<vmem>>, %arg12: memref<16x32xf32, #tpu.memory_space<vmem>>) attributes {dimension_semantics = [#tpu.dimension_semantics<arbitrary>], iteration_bounds = array<i64: 2>, scalar_prefetch = 0 : i64, scratch_operands = 1 : i64, tpu.core_type = #tpu.core_type<tc>, window_params = [{pipeline_mode = #tpu.pipeline_mode<synchronous>, transform_indices = @transform_0, window_bounds = array<i64: 2, 8, 32>}, {pipeline_mode = #tpu.pipeline_mode<synchronous>, transform_indices = @transform_1, window_bounds = array<i64: 2, 8>}, {pipeline_mode = #tpu.pipeline_mode<synchronous>, transform_indices = @transform_2, window_bounds = array<i64: 2, 8>}, {transform_indices = @transform_3, window_bounds = array<i64: 1, 32, 96>}, {transform_indices = @transform_4, window_bounds = array<i64: 1, 1, 96>}, {transform_indices = @transform_5, window_bounds = array<i64: 1, 32, 32>}, {transform_indices = @transform_6, window_bounds = array<i64: 1, 32, 64>}, {transform_indices = @transform_7, window_bounds = array<i64: 1, 1, 64>}, {transform_indices = @transform_8, window_bounds = array<i64: 1, 64, 32>}, {transform_indices = @transform_9, window_bounds = array<i64: 1, 6, 32>}, {pipeline_mode = #tpu.pipeline_mode<synchronous>, transform_indices = @transform_10, window_bounds = array<i64: 2, 32>}]} {
    %c0_i32 = arith.constant 0 : i32
    %0 = arith.cmpi eq, %arg0, %c0_i32 : i32
    %1 = arith.extui %0 : i1 to i32
    %c0_i32_0 = arith.constant 0 : i32
    %2 = arith.cmpi ne, %1, %c0_i32_0 : i32
    scf.if %2 {
      %c0_58 = arith.constant 0 : index
      %c0_59 = arith.constant 0 : index
      %c0_60 = arith.constant 0 : index
      %171 = vector.load %arg1[%c0_58, %c0_59, %c0_60] : memref<2x8x32xf32, #tpu.memory_space<vmem>>, vector<2x8x32xf32>
      %172 = vector.shape_cast %171 : vector<2x8x32xf32> to vector<16x32xf32>
      %c0_61 = arith.constant 0 : index
      %c0_62 = arith.constant 0 : index
      %173 = vector.load %arg12[%c0_61, %c0_62] : memref<16x32xf32, #tpu.memory_space<vmem>>, vector<16x32xf32>
      tpu.vector_store %arg12[%c0_61, %c0_62], %172 {strides = array<i32>} : memref<16x32xf32, #tpu.memory_space<vmem>>, vector<16x32xf32>,
    } else {
    }
    %c0 = arith.constant 0 : index
    %c0_1 = arith.constant 0 : index
    %3 = vector.load %arg2[%c0, %c0_1] : memref<2x8xf32, #tpu.memory_space<vmem>>, vector<2x8xf32>
    %4 = vector.shape_cast %3 : vector<2x8xf32> to vector<2x1x8xf32>
    %c0_2 = arith.constant 0 : index
    %c0_3 = arith.constant 0 : index
    %c0_4 = arith.constant 0 : index
    %5 = vector.load %arg10[%c0_2, %c0_3, %c0_4] : memref<1x6x32xf32, #tpu.memory_space<vmem>>, vector<1x6x32xf32>
    %6 = vector.shape_cast %5 : vector<1x6x32xf32> to vector<6x32xf32>
    %7 = vector.extract_strided_slice %6 {offsets = [0, 0], sizes = [1, 32], strides = [1, 1]} : vector<6x32xf32> to vector<1x32xf32>
    %8 = vector.extract_strided_slice %6 {offsets = [1, 0], sizes = [1, 32], strides = [1, 1]} : vector<6x32xf32> to vector<1x32xf32>
    %9 = vector.extract_strided_slice %6 {offsets = [2, 0], sizes = [1, 32], strides = [1, 1]} : vector<6x32xf32> to vector<1x32xf32>
    %10 = vector.extract_strided_slice %6 {offsets = [3, 0], sizes = [1, 32], strides = [1, 1]} : vector<6x32xf32> to vector<1x32xf32>
    %11 = vector.extract_strided_slice %6 {offsets = [4, 0], sizes = [1, 32], strides = [1, 1]} : vector<6x32xf32> to vector<1x32xf32>
    %12 = vector.extract_strided_slice %6 {offsets = [5, 0], sizes = [1, 32], strides = [1, 1]} : vector<6x32xf32> to vector<1x32xf32>
    %c0_5 = arith.constant 0 : index
    %c0_6 = arith.constant 0 : index
    %13 = vector.load %arg12[%c0_5, %c0_6] : memref<16x32xf32, #tpu.memory_space<vmem>>, vector<16x32xf32>
    %14 = arith.truncf %13 : vector<16x32xf32> to vector<16x32xbf16>
    %c0_7 = arith.constant 0 : index
    %c0_8 = arith.constant 0 : index
    %c0_9 = arith.constant 0 : index
    %15 = vector.load %arg4[%c0_7, %c0_8, %c0_9] : memref<1x32x96xbf16, #tpu.memory_space<vmem>>, vector<1x32x96xbf16>
    %16 = vector.shape_cast %15 : vector<1x32x96xbf16> to vector<32x96xbf16>
    %cst = arith.constant dense<0.000000e+00> : vector<16x96xf32>
    %17 = tpu.matmul %14, %16, %cst {dimension_numbers = #tpu.dot_dimension_numbers<[1], [0], [0], [1], [0, 0, 1, 1], [], []>} : vector<16x32xbf16>, vector<32x96xbf16>, vector<16x96xf32> -> vector<16x96xf32>
    %c0_10 = arith.constant 0 : index
    %c0_11 = arith.constant 0 : index
    %c0_12 = arith.constant 0 : index
    %18 = vector.load %arg5[%c0_10, %c0_11, %c0_12] : memref<1x1x96xf32, #tpu.memory_space<vmem>>, vector<1x1x96xf32>
    %19 = vector.shape_cast %18 : vector<1x1x96xf32> to vector<1x96xf32>
    %20 = vector.broadcast %19 : vector<1x96xf32> to vector<16x96xf32>
    %21 = arith.addf %17, %20 : vector<16x96xf32>
    %22 = vector.shape_cast %21 : vector<16x96xf32> to vector<2x8x96xf32>
    %23 = vector.extract_strided_slice %22 {offsets = [0, 0, 0], sizes = [2, 8, 32], strides = [1, 1, 1]} : vector<2x8x96xf32> to vector<2x8x32xf32>
    %24 = arith.truncf %23 : vector<2x8x32xf32> to vector<2x8x32xbf16>
    %25 = vector.extract_strided_slice %22 {offsets = [0, 0, 32], sizes = [2, 8, 32], strides = [1, 1, 1]} : vector<2x8x96xf32> to vector<2x8x32xf32>
    %26 = arith.truncf %25 : vector<2x8x32xf32> to vector<2x8x32xbf16>
    %27 = vector.extract_strided_slice %22 {offsets = [0, 0, 64], sizes = [2, 8, 32], strides = [1, 1, 1]} : vector<2x8x96xf32> to vector<2x8x32xf32>
    %28 = arith.truncf %27 : vector<2x8x32xf32> to vector<2x8x32xbf16>
    %29 = vector.extract_strided_slice %24 {offsets = [0, 0, 0], sizes = [2, 8, 8], strides = [1, 1, 1]} : vector<2x8x32xbf16> to vector<2x8x8xbf16>
    %30 = vector.extract_strided_slice %26 {offsets = [0, 0, 0], sizes = [2, 8, 8], strides = [1, 1, 1]} : vector<2x8x32xbf16> to vector<2x8x8xbf16>
    %31 = vector.extract_strided_slice %28 {offsets = [0, 0, 0], sizes = [2, 8, 8], strides = [1, 1, 1]} : vector<2x8x32xbf16> to vector<2x8x8xbf16>
    "tpu.trace_start"() <{level = 10 : i32, message = "bqd,bkd->bqk"}> : () -> ()
    %cst_13 = arith.constant dense<0.000000e+00> : vector<2x8x8xf32>
    %32 = tpu.matmul %29, %30, %cst_13 {dimension_numbers = #tpu.dot_dimension_numbers<[2], [2], [1], [1], [0, 0, 0, 1, 1, 1], [0], [0]>} : vector<2x8x8xbf16>, vector<2x8x8xbf16>, vector<2x8x8xf32> -> vector<2x8x8xf32>
    "tpu.trace_stop"() : () -> ()
    %33 = vector.broadcast %4 : vector<2x1x8xf32> to vector<2x8x8xf32>
    %34 = arith.addf %32, %33 : vector<2x8x8xf32>
    %cst_14 = arith.constant dense<0xFF800000> : vector<2x8xf32>
    %35 = vector.multi_reduction <maximumf>, %34, %cst_14 [2] : vector<2x8x8xf32> to vector<2x8xf32>
    %36 = vector.shape_cast %35 : vector<2x8xf32> to vector<2x8x1xf32>
    %37 = vector.broadcast %36 : vector<2x8x1xf32> to vector<2x8x8xf32>
    %38 = arith.subf %34, %37 : vector<2x8x8xf32>
    %39 = math.exp %38 : vector<2x8x8xf32>
    %cst_15 = arith.constant dense<0.000000e+00> : vector<2x8xf32>
    %40 = vector.multi_reduction <add>, %39, %cst_15 [2] : vector<2x8x8xf32> to vector<2x8xf32>
    %41 = vector.shape_cast %40 : vector<2x8xf32> to vector<2x8x1xf32>
    %42 = tpu.reciprocal %41 {approx = true} : vector<2x8x1xf32> -> vector<2x8x1xf32>
    %43 = vector.broadcast %42 : vector<2x8x1xf32> to vector<2x8x8xf32>
    %44 = arith.mulf %39, %43 : vector<2x8x8xf32>
    %45 = arith.truncf %44 : vector<2x8x8xf32> to vector<2x8x8xbf16>
    "tpu.trace_start"() <{level = 10 : i32, message = "bqk,bkd->bqd"}> : () -> ()
    %cst_16 = arith.constant dense<0.000000e+00> : vector<2x8x8xf32>
    %46 = tpu.matmul %45, %31, %cst_16 {dimension_numbers = #tpu.dot_dimension_numbers<[2], [1], [1], [2], [0, 0, 0, 1, 1, 2], [0], [0]>} : vector<2x8x8xbf16>, vector<2x8x8xbf16>, vector<2x8x8xf32> -> vector<2x8x8xf32>
    "tpu.trace_stop"() : () -> ()
    %47 = vector.extract_strided_slice %24 {offsets = [0, 0, 8], sizes = [2, 8, 8], strides = [1, 1, 1]} : vector<2x8x32xbf16> to vector<2x8x8xbf16>
    %48 = vector.extract_strided_slice %26 {offsets = [0, 0, 8], sizes = [2, 8, 8], strides = [1, 1, 1]} : vector<2x8x32xbf16> to vector<2x8x8xbf16>
    %49 = vector.extract_strided_slice %28 {offsets = [0, 0, 8], sizes = [2, 8, 8], strides = [1, 1, 1]} : vector<2x8x32xbf16> to vector<2x8x8xbf16>
    "tpu.trace_start"() <{level = 10 : i32, message = "bqd,bkd->bqk"}> : () -> ()
    %cst_17 = arith.constant dense<0.000000e+00> : vector<2x8x8xf32>
    %50 = tpu.matmul %47, %48, %cst_17 {dimension_numbers = #tpu.dot_dimension_numbers<[2], [2], [1], [1], [0, 0, 0, 1, 1, 1], [0], [0]>} : vector<2x8x8xbf16>, vector<2x8x8xbf16>, vector<2x8x8xf32> -> vector<2x8x8xf32>
    "tpu.trace_stop"() : () -> ()
    %51 = vector.broadcast %4 : vector<2x1x8xf32> to vector<2x8x8xf32>
    %52 = arith.addf %50, %51 : vector<2x8x8xf32>
    %cst_18 = arith.constant dense<0xFF800000> : vector<2x8xf32>
    %53 = vector.multi_reduction <maximumf>, %52, %cst_18 [2] : vector<2x8x8xf32> to vector<2x8xf32>
    %54 = vector.shape_cast %53 : vector<2x8xf32> to vector<2x8x1xf32>
    %55 = vector.broadcast %54 : vector<2x8x1xf32> to vector<2x8x8xf32>
    %56 = arith.subf %52, %55 : vector<2x8x8xf32>
    %57 = math.exp %56 : vector<2x8x8xf32>
    %cst_19 = arith.constant dense<0.000000e+00> : vector<2x8xf32>
    %58 = vector.multi_reduction <add>, %57, %cst_19 [2] : vector<2x8x8xf32> to vector<2x8xf32>
    %59 = vector.shape_cast %58 : vector<2x8xf32> to vector<2x8x1xf32>
    %60 = tpu.reciprocal %59 {approx = true} : vector<2x8x1xf32> -> vector<2x8x1xf32>
    %61 = vector.broadcast %60 : vector<2x8x1xf32> to vector<2x8x8xf32>
    %62 = arith.mulf %57, %61 : vector<2x8x8xf32>
    %63 = arith.truncf %62 : vector<2x8x8xf32> to vector<2x8x8xbf16>
    "tpu.trace_start"() <{level = 10 : i32, message = "bqk,bkd->bqd"}> : () -> ()
    %cst_20 = arith.constant dense<0.000000e+00> : vector<2x8x8xf32>
    %64 = tpu.matmul %63, %49, %cst_20 {dimension_numbers = #tpu.dot_dimension_numbers<[2], [1], [1], [2], [0, 0, 0, 1, 1, 2], [0], [0]>} : vector<2x8x8xbf16>, vector<2x8x8xbf16>, vector<2x8x8xf32> -> vector<2x8x8xf32>
    "tpu.trace_stop"() : () -> ()
    %65 = vector.extract_strided_slice %24 {offsets = [0, 0, 16], sizes = [2, 8, 8], strides = [1, 1, 1]} : vector<2x8x32xbf16> to vector<2x8x8xbf16>
    %66 = vector.extract_strided_slice %26 {offsets = [0, 0, 16], sizes = [2, 8, 8], strides = [1, 1, 1]} : vector<2x8x32xbf16> to vector<2x8x8xbf16>
    %67 = vector.extract_strided_slice %28 {offsets = [0, 0, 16], sizes = [2, 8, 8], strides = [1, 1, 1]} : vector<2x8x32xbf16> to vector<2x8x8xbf16>
    "tpu.trace_start"() <{level = 10 : i32, message = "bqd,bkd->bqk"}> : () -> ()
    %cst_21 = arith.constant dense<0.000000e+00> : vector<2x8x8xf32>
    %68 = tpu.matmul %65, %66, %cst_21 {dimension_numbers = #tpu.dot_dimension_numbers<[2], [2], [1], [1], [0, 0, 0, 1, 1, 1], [0], [0]>} : vector<2x8x8xbf16>, vector<2x8x8xbf16>, vector<2x8x8xf32> -> vector<2x8x8xf32>
    "tpu.trace_stop"() : () -> ()
    %69 = vector.broadcast %4 : vector<2x1x8xf32> to vector<2x8x8xf32>
    %70 = arith.addf %68, %69 : vector<2x8x8xf32>
    %cst_22 = arith.constant dense<0xFF800000> : vector<2x8xf32>
    %71 = vector.multi_reduction <maximumf>, %70, %cst_22 [2] : vector<2x8x8xf32> to vector<2x8xf32>
    %72 = vector.shape_cast %71 : vector<2x8xf32> to vector<2x8x1xf32>
    %73 = vector.broadcast %72 : vector<2x8x1xf32> to vector<2x8x8xf32>
    %74 = arith.subf %70, %73 : vector<2x8x8xf32>
    %75 = math.exp %74 : vector<2x8x8xf32>
    %cst_23 = arith.constant dense<0.000000e+00> : vector<2x8xf32>
    %76 = vector.multi_reduction <add>, %75, %cst_23 [2] : vector<2x8x8xf32> to vector<2x8xf32>
    %77 = vector.shape_cast %76 : vector<2x8xf32> to vector<2x8x1xf32>
    %78 = tpu.reciprocal %77 {approx = true} : vector<2x8x1xf32> -> vector<2x8x1xf32>
    %79 = vector.broadcast %78 : vector<2x8x1xf32> to vector<2x8x8xf32>
    %80 = arith.mulf %75, %79 : vector<2x8x8xf32>
    %81 = arith.truncf %80 : vector<2x8x8xf32> to vector<2x8x8xbf16>
    "tpu.trace_start"() <{level = 10 : i32, message = "bqk,bkd->bqd"}> : () -> ()
    %cst_24 = arith.constant dense<0.000000e+00> : vector<2x8x8xf32>
    %82 = tpu.matmul %81, %67, %cst_24 {dimension_numbers = #tpu.dot_dimension_numbers<[2], [1], [1], [2], [0, 0, 0, 1, 1, 2], [0], [0]>} : vector<2x8x8xbf16>, vector<2x8x8xbf16>, vector<2x8x8xf32> -> vector<2x8x8xf32>
    "tpu.trace_stop"() : () -> ()
    %83 = vector.extract_strided_slice %24 {offsets = [0, 0, 24], sizes = [2, 8, 8], strides = [1, 1, 1]} : vector<2x8x32xbf16> to vector<2x8x8xbf16>
    %84 = vector.extract_strided_slice %26 {offsets = [0, 0, 24], sizes = [2, 8, 8], strides = [1, 1, 1]} : vector<2x8x32xbf16> to vector<2x8x8xbf16>
    %85 = vector.extract_strided_slice %28 {offsets = [0, 0, 24], sizes = [2, 8, 8], strides = [1, 1, 1]} : vector<2x8x32xbf16> to vector<2x8x8xbf16>
    "tpu.trace_start"() <{level = 10 : i32, message = "bqd,bkd->bqk"}> : () -> ()
    %cst_25 = arith.constant dense<0.000000e+00> : vector<2x8x8xf32>
    %86 = tpu.matmul %83, %84, %cst_25 {dimension_numbers = #tpu.dot_dimension_numbers<[2], [2], [1], [1], [0, 0, 0, 1, 1, 1], [0], [0]>} : vector<2x8x8xbf16>, vector<2x8x8xbf16>, vector<2x8x8xf32> -> vector<2x8x8xf32>
    "tpu.trace_stop"() : () -> ()
    %87 = vector.broadcast %4 : vector<2x1x8xf32> to vector<2x8x8xf32>
    %88 = arith.addf %86, %87 : vector<2x8x8xf32>
    %cst_26 = arith.constant dense<0xFF800000> : vector<2x8xf32>
    %89 = vector.multi_reduction <maximumf>, %88, %cst_26 [2] : vector<2x8x8xf32> to vector<2x8xf32>
    %90 = vector.shape_cast %89 : vector<2x8xf32> to vector<2x8x1xf32>
    %91 = vector.broadcast %90 : vector<2x8x1xf32> to vector<2x8x8xf32>
    %92 = arith.subf %88, %91 : vector<2x8x8xf32>
    %93 = math.exp %92 : vector<2x8x8xf32>
    %cst_27 = arith.constant dense<0.000000e+00> : vector<2x8xf32>
    %94 = vector.multi_reduction <add>, %93, %cst_27 [2] : vector<2x8x8xf32> to vector<2x8xf32>
    %95 = vector.shape_cast %94 : vector<2x8xf32> to vector<2x8x1xf32>
    %96 = tpu.reciprocal %95 {approx = true} : vector<2x8x1xf32> -> vector<2x8x1xf32>
    %97 = vector.broadcast %96 : vector<2x8x1xf32> to vector<2x8x8xf32>
    %98 = arith.mulf %93, %97 : vector<2x8x8xf32>
    %99 = arith.truncf %98 : vector<2x8x8xf32> to vector<2x8x8xbf16>
    "tpu.trace_start"() <{level = 10 : i32, message = "bqk,bkd->bqd"}> : () -> ()
    %cst_28 = arith.constant dense<0.000000e+00> : vector<2x8x8xf32>
    %100 = tpu.matmul %99, %85, %cst_28 {dimension_numbers = #tpu.dot_dimension_numbers<[2], [1], [1], [2], [0, 0, 0, 1, 1, 2], [0], [0]>} : vector<2x8x8xbf16>, vector<2x8x8xbf16>, vector<2x8x8xf32> -> vector<2x8x8xf32>
    "tpu.trace_stop"() : () -> ()
    %101 = tpu.concatenate %46, %64, %82, %100 in 2 : vector<2x8x8xf32>, vector<2x8x8xf32>, vector<2x8x8xf32>, vector<2x8x8xf32> -> vector<2x8x32xf32>
    %102 = vector.shape_cast %101 : vector<2x8x32xf32> to vector<16x32xf32>
    %103 = arith.truncf %102 : vector<16x32xf32> to vector<16x32xbf16>
    %c0_29 = arith.constant 0 : index
    %c0_30 = arith.constant 0 : index
    %c0_31 = arith.constant 0 : index
    %104 = vector.load %arg6[%c0_29, %c0_30, %c0_31] : memref<1x32x32xbf16, #tpu.memory_space<vmem>>, vector<1x32x32xbf16>
    %105 = vector.shape_cast %104 : vector<1x32x32xbf16> to vector<32x32xbf16>
    %cst_32 = arith.constant dense<0.000000e+00> : vector<16x32xf32>
    %106 = tpu.matmul %103, %105, %cst_32 {dimension_numbers = #tpu.dot_dimension_numbers<[1], [0], [0], [1], [0, 0, 1, 1], [], []>} : vector<16x32xbf16>, vector<32x32xbf16>, vector<16x32xf32> -> vector<16x32xf32>
    %107 = vector.broadcast %7 : vector<1x32xf32> to vector<16x32xf32>
    %108 = arith.addf %106, %107 : vector<16x32xf32>
    %109 = arith.addf %13, %108 : vector<16x32xf32>
    %cst_33 = arith.constant dense<0.000000e+00> : vector<16xf32>
    %110 = vector.multi_reduction <add>, %109, %cst_33 [1] : vector<16x32xf32> to vector<16xf32>
    %111 = vector.shape_cast %110 : vector<16xf32> to vector<16x1xf32>
    %cst_34 = arith.constant 3.200000e+01 : f32
    %112 = vector.broadcast %cst_34 : f32 to vector<16x1xf32>
    %113 = arith.divf %111, %112 : vector<16x1xf32>
    %114 = vector.broadcast %113 : vector<16x1xf32> to vector<16x32xf32>
    %115 = arith.subf %109, %114 : vector<16x32xf32>
    %116 = arith.mulf %115, %115 : vector<16x32xf32>
    %cst_35 = arith.constant dense<0.000000e+00> : vector<16xf32>
    %117 = vector.multi_reduction <add>, %116, %cst_35 [1] : vector<16x32xf32> to vector<16xf32>
    %118 = vector.shape_cast %117 : vector<16xf32> to vector<16x1xf32>
    %cst_36 = arith.constant 3.200000e+01 : f32
    %119 = vector.broadcast %cst_36 : f32 to vector<16x1xf32>
    %120 = arith.divf %118, %119 : vector<16x1xf32>
    %cst_37 = arith.constant 9.99999974E-6 : f32
    %121 = vector.broadcast %cst_37 : f32 to vector<16x1xf32>
    %122 = arith.addf %120, %121 : vector<16x1xf32>
    %123 = math.rsqrt %122 : vector<16x1xf32>
    %124 = vector.broadcast %123 : vector<16x1xf32> to vector<16x32xf32>
    %125 = arith.mulf %115, %124 : vector<16x32xf32>
    %126 = vector.broadcast %9 : vector<1x32xf32> to vector<16x32xf32>
    %127 = arith.mulf %125, %126 : vector<16x32xf32>
    %128 = vector.broadcast %10 : vector<1x32xf32> to vector<16x32xf32>
    %129 = arith.addf %127, %128 : vector<16x32xf32>
    %130 = arith.truncf %129 : vector<16x32xf32> to vector<16x32xbf16>
    %c0_38 = arith.constant 0 : index
    %c0_39 = arith.constant 0 : index
    %c0_40 = arith.constant 0 : index
    %131 = vector.load %arg7[%c0_38, %c0_39, %c0_40] : memref<1x32x64xbf16, #tpu.memory_space<vmem>>, vector<1x32x64xbf16>
    %132 = vector.shape_cast %131 : vector<1x32x64xbf16> to vector<32x64xbf16>
    %cst_41 = arith.constant dense<0.000000e+00> : vector<16x64xf32>
    %133 = tpu.matmul %130, %132, %cst_41 {dimension_numbers = #tpu.dot_dimension_numbers<[1], [0], [0], [1], [0, 0, 1, 1], [], []>} : vector<16x32xbf16>, vector<32x64xbf16>, vector<16x64xf32> -> vector<16x64xf32>
    %c0_42 = arith.constant 0 : index
    %c0_43 = arith.constant 0 : index
    %c0_44 = arith.constant 0 : index
    %134 = vector.load %arg8[%c0_42, %c0_43, %c0_44] : memref<1x1x64xf32, #tpu.memory_space<vmem>>, vector<1x1x64xf32>
    %135 = vector.shape_cast %134 : vector<1x1x64xf32> to vector<1x64xf32>
    %136 = vector.broadcast %135 : vector<1x64xf32> to vector<16x64xf32>
    %137 = arith.addf %133, %136 : vector<16x64xf32>
    %cst_45 = arith.constant 0.000000e+00 : f32
    %138 = vector.broadcast %cst_45 : f32 to vector<16x64xf32>
    %139 = arith.maximumf %137, %138 : vector<16x64xf32>
    %140 = arith.truncf %139 : vector<16x64xf32> to vector<16x64xbf16>
    %c0_46 = arith.constant 0 : index
    %c0_47 = arith.constant 0 : index
    %c0_48 = arith.constant 0 : index
    %141 = vector.load %arg9[%c0_46, %c0_47, %c0_48] : memref<1x64x32xbf16, #tpu.memory_space<vmem>>, vector<1x64x32xbf16>
    %142 = vector.shape_cast %141 : vector<1x64x32xbf16> to vector<64x32xbf16>
    %cst_49 = arith.constant dense<0.000000e+00> : vector<16x32xf32>
    %143 = tpu.matmul %140, %142, %cst_49 {dimension_numbers = #tpu.dot_dimension_numbers<[1], [0], [0], [1], [0, 0, 1, 1], [], []>} : vector<16x64xbf16>, vector<64x32xbf16>, vector<16x32xf32> -> vector<16x32xf32>
    %144 = vector.broadcast %8 : vector<1x32xf32> to vector<16x32xf32>
    %145 = arith.addf %143, %144 : vector<16x32xf32>
    %146 = arith.addf %129, %145 : vector<16x32xf32>
    %cst_50 = arith.constant dense<0.000000e+00> : vector<16xf32>
    %147 = vector.multi_reduction <add>, %146, %cst_50 [1] : vector<16x32xf32> to vector<16xf32>
    %148 = vector.shape_cast %147 : vector<16xf32> to vector<16x1xf32>
    %cst_51 = arith.constant 3.200000e+01 : f32
    %149 = vector.broadcast %cst_51 : f32 to vector<16x1xf32>
    %150 = arith.divf %148, %149 : vector<16x1xf32>
    %151 = vector.broadcast %150 : vector<16x1xf32> to vector<16x32xf32>
    %152 = arith.subf %146, %151 : vector<16x32xf32>
    %153 = arith.mulf %152, %152 : vector<16x32xf32>
    %cst_52 = arith.constant dense<0.000000e+00> : vector<16xf32>
    %154 = vector.multi_reduction <add>, %153, %cst_52 [1] : vector<16x32xf32> to vector<16xf32>
    %155 = vector.shape_cast %154 : vector<16xf32> to vector<16x1xf32>
    %cst_53 = arith.constant 3.200000e+01 : f32
    %156 = vector.broadcast %cst_53 : f32 to vector<16x1xf32>
    %157 = arith.divf %155, %156 : vector<16x1xf32>
    %cst_54 = arith.constant 9.99999974E-6 : f32
    %158 = vector.broadcast %cst_54 : f32 to vector<16x1xf32>
    %159 = arith.addf %157, %158 : vector<16x1xf32>
    %160 = math.rsqrt %159 : vector<16x1xf32>
    %161 = vector.broadcast %160 : vector<16x1xf32> to vector<16x32xf32>
    %162 = arith.mulf %152, %161 : vector<16x32xf32>
    %163 = vector.broadcast %11 : vector<1x32xf32> to vector<16x32xf32>
    %164 = arith.mulf %162, %163 : vector<16x32xf32>
    %165 = vector.broadcast %12 : vector<1x32xf32> to vector<16x32xf32>
    %166 = arith.addf %164, %165 : vector<16x32xf32>
    %c0_55 = arith.constant 0 : index
    %c0_56 = arith.constant 0 : index
    %167 = vector.load %arg12[%c0_55, %c0_56] : memref<16x32xf32, #tpu.memory_space<vmem>>, vector<16x32xf32>
    tpu.vector_store %arg12[%c0_55, %c0_56], %166 {strides = array<i32>} : memref<16x32xf32, #tpu.memory_space<vmem>>, vector<16x32xf32>,
    %c1_i32 = arith.constant 1 : i32
    %168 = arith.cmpi eq, %arg0, %c1_i32 : i32
    %169 = arith.extui %168 : i1 to i32
    %c0_i32_57 = arith.constant 0 : i32
    %170 = arith.cmpi ne, %169, %c0_i32_57 : i32
    scf.if %170 {
      %171 = vector.shape_cast %166 : vector<16x32xf32> to vector<2x8x32xf32>
      %c0_58 = arith.constant 0 : index
      %c0_59 = arith.constant 0 : index
      %172 = vector.load %arg3[%c0_58, %c0_59] : memref<2x8xf32, #tpu.memory_space<vmem>>, vector<2x8xf32>
      %173 = vector.shape_cast %172 : vector<2x8xf32> to vector<2x8x1xf32>
      %174 = vector.broadcast %173 : vector<2x8x1xf32> to vector<2x8x32xf32>
      %175 = arith.mulf %171, %174 : vector<2x8x32xf32>
      %cst_60 = arith.constant dense<0.000000e+00> : vector<2x32xf32>
      %176 = vector.multi_reduction <add>, %175, %cst_60 [1] : vector<2x8x32xf32> to vector<2x32xf32>
      %c0_61 = arith.constant 0 : index
      %c0_62 = arith.constant 0 : index
      %177 = vector.load %arg11[%c0_61, %c0_62] : memref<2x32xf32, #tpu.memory_space<vmem>>, vector<2x32xf32>
      tpu.vector_store %arg11[%c0_61, %c0_62], %176 {strides = array<i32>} : memref<2x32xf32, #tpu.memory_space<vmem>>, vector<2x32xf32>,
    } else {
    }
    return
  }
  func.func @transform_0(%arg0: i32) -> (i32, i32, i32) {
    %c0_i32 = arith.constant 0 : i32
    %c0_i32_0 = arith.constant 0 : i32
    %c0_i32_1 = arith.constant 0 : i32
    %c0_i32_2 = arith.constant 0 : i32
    return %c0_i32, %c0_i32_0, %c0_i32_1 : i32, i32, i32
  }
  func.func @transform_1(%arg0: i32) -> (i32, i32) {
    %c0_i32 = arith.constant 0 : i32
    %c0_i32_0 = arith.constant 0 : i32
    %c0_i32_1 = arith.constant 0 : i32
    return %c0_i32, %c0_i32_0 : i32, i32
  }
  func.func @transform_2(%arg0: i32) -> (i32, i32) {
    %c0_i32 = arith.constant 0 : i32
    %c0_i32_0 = arith.constant 0 : i32
    %c0_i32_1 = arith.constant 0 : i32
    return %c0_i32, %c0_i32_0 : i32, i32
  }
  func.func @transform_3(%arg0: i32) -> (i32, i32, i32) {
    %c0_i32 = arith.constant 0 : i32
    %c0_i32_0 = arith.constant 0 : i32
    %c0_i32_1 = arith.constant 0 : i32
    return %arg0, %c0_i32, %c0_i32_0 : i32, i32, i32
  }
  func.func @transform_4(%arg0: i32) -> (i32, i32, i32) {
    %c0_i32 = arith.constant 0 : i32
    %c0_i32_0 = arith.constant 0 : i32
    %c0_i32_1 = arith.constant 0 : i32
    return %arg0, %c0_i32, %c0_i32_0 : i32, i32, i32
  }
  func.func @transform_5(%arg0: i32) -> (i32, i32, i32) {
    %c0_i32 = arith.constant 0 : i32
    %c0_i32_0 = arith.constant 0 : i32
    %c0_i32_1 = arith.constant 0 : i32
    return %arg0, %c0_i32, %c0_i32_0 : i32, i32, i32
  }
  func.func @transform_6(%arg0: i32) -> (i32, i32, i32) {
    %c0_i32 = arith.constant 0 : i32
    %c0_i32_0 = arith.constant 0 : i32
    %c0_i32_1 = arith.constant 0 : i32
    return %arg0, %c0_i32, %c0_i32_0 : i32, i32, i32
  }
  func.func @transform_7(%arg0: i32) -> (i32, i32, i32) {
    %c0_i32 = arith.constant 0 : i32
    %c0_i32_0 = arith.constant 0 : i32
    %c0_i32_1 = arith.constant 0 : i32
    return %arg0, %c0_i32, %c0_i32_0 : i32, i32, i32
  }
  func.func @transform_8(%arg0: i32) -> (i32, i32, i32) {
    %c0_i32 = arith.constant 0 : i32
    %c0_i32_0 = arith.constant 0 : i32
    %c0_i32_1 = arith.constant 0 : i32
    return %arg0, %c0_i32, %c0_i32_0 : i32, i32, i32
  }
  func.func @transform_9(%arg0: i32) -> (i32, i32, i32) {
    %c0_i32 = arith.constant 0 : i32
    %c0_i32_0 = arith.constant 0 : i32
    %c0_i32_1 = arith.constant 0 : i32
    return %arg0, %c0_i32, %c0_i32_0 : i32, i32, i32
  }
  func.func @transform_10(%arg0: i32) -> (i32, i32) {
    %c0_i32 = arith.constant 0 : i32
    %c0_i32_0 = arith.constant 0 : i32
    %c0_i32_1 = arith.constant 0 : i32
    return %c0_i32, %c0_i32_0 : i32, i32
  }
}

</mosaic_0001>

<llo_original>
// kernel: tpu_custom_call.1
$region0: #{tpu_custom_call.1}
  #allocation0 [shape = 'u32[]', space=smem, size = 0x4, offset = 0x4, fixed_abs, tag = 'smem constant byte address 0x4 - core index']
  #allocation1 [shape = 'u32[72,128]{1,0:T(1,128)}', space=vmem, size = 0x9000, scoped, tag = 'internal scratch']
  #allocation2 [shape = 'f32[16,32]{1,0:T(8,128)}', space=vmem, size = 0x2000, scoped, tag = 'scratch operand']
  %s0 = inlined_call_operand.hbm [shape: f32[2,8,32], index: 0, kind: input, shape index: {}]
  %s1 = inlined_call_operand.vmem [shape: f32[2,8], index: 1, kind: input, shape index: {}]
  %s2 = inlined_call_operand.hbm [shape: f32[2,8], index: 2, kind: input, shape index: {}]
  %s3 = inlined_call_operand.vmem [shape: bf16[2,32,96], index: 3, kind: input, shape index: {}]
  %s4 = inlined_call_operand.hbm [shape: f32[2,1,96], index: 4, kind: input, shape index: {}]
  %s5 = inlined_call_operand.vmem [shape: bf16[2,32,32], index: 5, kind: input, shape index: {}]
  %s6 = inlined_call_operand.vmem [shape: bf16[2,32,64], index: 6, kind: input, shape index: {}]
  %s7 = inlined_call_operand.hbm [shape: f32[2,1,64], index: 7, kind: input, shape index: {}]
  %s8 = inlined_call_operand.vmem [shape: bf16[2,64,32], index: 8, kind: input, shape index: {}]
  %s9 = inlined_call_operand.vmem [shape: f32[2,6,32], index: 9, kind: input, shape index: {}]
  %s10 = inlined_call_operand.hbm [shape: f32[2,32], index: 10, kind: output, shape index: {}]
  %s11 = sld [smem:[#allocation0]]
  $region97: #{tpu_custom_call.1} parent=0
    _
  %s13 = ssub.s32 1, %s11
  %s14 = scalar_select 0, %s13, %s11
  $region1: #{tpu_custom_call.1} parent=0
    #allocation3 [shape = 'u8[8192]{0}', space=vmem, size = 0x2000, scoped, tag = 'input window, operand 0, single buffered']
    #allocation4 [shape = 's32[2]{0}', space=sflag, size = 0x8, scoped, tag = 'scoped memory for tpu_custom_call.1']
    #allocation5 [shape = 's32[2]{0}', space=sflag, size = 0x8, scoped, tag = 'scoped memory for tpu_custom_call.1']
    #allocation6 [shape = 'u8[1024]{0}', space=vmem, size = 0x400, scoped, tag = 'input window, operand 2, single buffered']
    #allocation7 [shape = 's32[1]{0}', space=sflag, size = 0x4, scoped, tag = 'scoped memory for tpu_custom_call.1']
    #allocation8 [shape = 'u8[1024]{0}', space=vmem, size = 0x400, scoped, tag = 'input window, operand 4']
    #allocation9 [shape = 'u8[1024]{0}', space=vmem, size = 0x400, scoped, tag = 'input window, operand 7']
    #allocation10 [shape = 'u8[1024]{0}', space=vmem, size = 0x400, scoped, tag = 'output window, operand 0, single buffered']
    %15 = vsyncpa [#allocation4], 0
    %16 = vsyncpa [#allocation7], 0
    %17 = vsyncpa [#allocation5], 0
    loop: start=0, step=1, limit=4
    $region2: #{tpu_custom_call.1} parent=1 // loop_pre_header
      _
    $region3: #{tpu_custom_call.1} parent=1 // loop_header
      %s19 = sphi 0, %s23
      %p20 = scmp.ge.s32.totalorder %s19, 4
      %s27 = sphi 0, %s27
      %s29 = sphi 0, %s27
      %s30 = sphi 0, %s29
      %s44 = sphi 0, %s30
      %s48 = sphi 0, %s48
      %s50 = sphi 0, %s48
      %s51 = sphi 0, %s50
      %s65 = sphi 0, %s51
      %s69 = sphi 0, %s69
      %s71 = sphi 0, %s69
      %s72 = sphi 0, %s71
      %s86 = sphi 0, %s72
      %s92 = sphi 0, %s94
      %s95 = sphi 0, %s92
      %s96 = sphi 0, %s95
      %s112 = sphi 0, %s96
      %s118 = sphi 0, %s120
      %s121 = sphi 0, %s118
      %s122 = sphi 0, %s121
      %s138 = sphi 0, %s122
      %s144 = sphi 0, %s146
      %s147 = sphi 0, %s144
      %s148 = sphi 0, %s147
      %s164 = sphi 0, %s148
      %s170 = sphi 0, %s172
      %s173 = sphi 0, %s170
      %s174 = sphi 0, %s173
      %s190 = sphi 0, %s174
      %s196 = sphi 0, %s198
      %s199 = sphi 0, %s196
      %s200 = sphi 0, %s199
      %s216 = sphi 0, %s200
      %s222 = sphi 0, %s224
      %s225 = sphi 0, %s222
      %s226 = sphi 0, %s225
      %s242 = sphi 0, %s226
      %s248 = sphi 0, %s250
      %s251 = sphi 0, %s248
      %s252 = sphi 0, %s251
      %s268 = sphi 0, %s252
      %s272 = sphi 0, %s272
      %s274 = sphi 0, %s272
      %s275 = sphi 0, %s274
      %s289 = sphi 0, %s275
    $region4: #{tpu_custom_call.1} parent=1 // loop_header_branch
      %22 = sbr.rel (%p20) target = $region8
    $region5: #{tpu_custom_call.1} parent=1 // loop_body
      %s24 = ssub.s32 %s19, 1
      %s25 = ssub.s32 %s19, 2
      %s26 = sadd.s32 %s19, 1
      %s28 = sadd.s32 %s27, 1
      %p31 = scmp.eq.s32.totalorder %s19, 1
      %p32 = scmp.ne.s32.totalorder %s27, %s29
      %p33 = scmp.eq.s32.totalorder %s19, 0
      %p34 = por %p32, %p33
      %p35 = scmp.ne.s32.totalorder %s27, %s29
      %p36 = scmp.eq.s32.totalorder %s24, 1
      %p37 = por %p35, %p36
      %p38 = scmp.ne.s32.totalorder %s29, %s30
      %p39 = scmp.eq.s32.totalorder %s24, 0
      %p40 = por %p38, %p39
      %p41 = scmp.ne.s32.totalorder %s29, %s30
      %p42 = scmp.eq.s32.totalorder %s25, 1
      %p43 = por %p41, %p42
      %p45 = scmp.ne.s32.totalorder %s30, %s44
      %p46 = scmp.eq.s32.totalorder %s25, 0
      %p47 = por %p45, %p46
      %s49 = sadd.s32 %s48, 1
      %p52 = scmp.eq.s32.totalorder %s19, 1
      %p53 = scmp.ne.s32.totalorder %s48, %s50
      %p54 = scmp.eq.s32.totalorder %s19, 0
      %p55 = por %p53, %p54
      %p56 = scmp.ne.s32.totalorder %s48, %s50
      %p57 = scmp.eq.s32.totalorder %s24, 1
      %p58 = por %p56, %p57
      %p59 = scmp.ne.s32.totalorder %s50, %s51
      %p60 = scmp.eq.s32.totalorder %s24, 0
      %p61 = por %p59, %p60
      %p62 = scmp.ne.s32.totalorder %s50, %s51
      %p63 = scmp.eq.s32.totalorder %s25, 1
      %p64 = por %p62, %p63
      %p66 = scmp.ne.s32.totalorder %s51, %s65
      %p67 = scmp.eq.s32.totalorder %s25, 0
      %p68 = por %p66, %p67
      %s70 = sadd.s32 %s69, 1
      %p73 = scmp.eq.s32.totalorder %s19, 1
      %p74 = scmp.ne.s32.totalorder %s69, %s71
      %p75 = scmp.eq.s32.totalorder %s19, 0
      %p76 = por %p74, %p75
      %p77 = scmp.ne.s32.totalorder %s69, %s71
      %p78 = scmp.eq.s32.totalorder %s24, 1
      %p79 = por %p77, %p78
      %p80 = scmp.ne.s32.totalorder %s71, %s72
      %p81 = scmp.eq.s32.totalorder %s24, 0
      %p82 = por %p80, %p81
      %p83 = scmp.ne.s32.totalorder %s71, %s72
      %p84 = scmp.eq.s32.totalorder %s25, 1
      %p85 = por %p83, %p84
      %p87 = scmp.ne.s32.totalorder %s72, %s86
      %p88 = scmp.eq.s32.totalorder %s25, 0
      %p89 = por %p87, %p88
      %s90 = ssub.s32 %s19, %s26
      %p91 = scmp.eq.s32.totalorder %s90, 0
      %s93 = sadd.s32 %s92, 1
      %s94 = scalar_select %p91, %s92, %s93
      %p97 = pneg %p91
      %p98 = scmp.eq.s32.totalorder %s19, 1
      %p99 = por %p97, %p98
      %p100 = scmp.ne.s32.totalorder %s92, %s95
      %p101 = scmp.eq.s32.totalorder %s19, 0
      %p102 = por %p100, %p101
      %p103 = scmp.ne.s32.totalorder %s92, %s95
      %p104 = scmp.eq.s32.totalorder %s24, 1
      %p105 = por %p103, %p104
      %p106 = scmp.ne.s32.totalorder %s95, %s96
      %p107 = scmp.eq.s32.totalorder %s24, 0
      %p108 = por %p106, %p107
      %p109 = scmp.ne.s32.totalorder %s95, %s96
      %p110 = scmp.eq.s32.totalorder %s25, 1
      %p111 = por %p109, %p110
      %p113 = scmp.ne.s32.totalorder %s96, %s112
      %p114 = scmp.eq.s32.totalorder %s25, 0
      %p115 = por %p113, %p114
      %s116 = ssub.s32 %s19, %s26
      %p117 = scmp.eq.s32.totalorder %s116, 0
      %s119 = sadd.s32 %s118, 1
      %s120 = scalar_select %p117, %s118, %s119
      %p123 = pneg %p117
      %p124 = scmp.eq.s32.totalorder %s19, 1
      %p125 = por %p123, %p124
      %p126 = scmp.ne.s32.totalorder %s118, %s121
      %p127 = scmp.eq.s32.totalorder %s19, 0
      %p128 = por %p126, %p127
      %p129 = scmp.ne.s32.totalorder %s118, %s121
      %p130 = scmp.eq.s32.totalorder %s24, 1
      %p131 = por %p129, %p130
      %p132 = scmp.ne.s32.totalorder %s121, %s122
      %p133 = scmp.eq.s32.totalorder %s24, 0
      %p134 = por %p132, %p133
      %p135 = scmp.ne.s32.totalorder %s121, %s122
      %p136 = scmp.eq.s32.totalorder %s25, 1
      %p137 = por %p135, %p136
      %p139 = scmp.ne.s32.totalorder %s122, %s138
      %p140 = scmp.eq.s32.totalorder %s25, 0
      %p141 = por %p139, %p140
      %s142 = ssub.s32 %s19, %s26
      %p143 = scmp.eq.s32.totalorder %s142, 0
      %s145 = sadd.s32 %s144, 1
      %s146 = scalar_select %p143, %s144, %s145
      %p149 = pneg %p143
      %p150 = scmp.eq.s32.totalorder %s19, 1
      %p151 = por %p149, %p150
      %p152 = scmp.ne.s32.totalorder %s144, %s147
      %p153 = scmp.eq.s32.totalorder %s19, 0
      %p154 = por %p152, %p153
      %p155 = scmp.ne.s32.totalorder %s144, %s147
      %p156 = scmp.eq.s32.totalorder %s24, 1
      %p157 = por %p155, %p156
      %p158 = scmp.ne.s32.totalorder %s147, %s148
      %p159 = scmp.eq.s32.totalorder %s24, 0
      %p160 = por %p158, %p159
      %p161 = scmp.ne.s32.totalorder %s147, %s148
      %p162 = scmp.eq.s32.totalorder %s25, 1
      %p163 = por %p161, %p162
      %p165 = scmp.ne.s32.totalorder %s148, %s164
      %p166 = scmp.eq.s32.totalorder %s25, 0
      %p167 = por %p165, %p166
      %s168 = ssub.s32 %s19, %s26
      %p169 = scmp.eq.s32.totalorder %s168, 0
      %s171 = sadd.s32 %s170, 1
      %s172 = scalar_select %p169, %s170, %s171
      %p175 = pneg %p169
      %p176 = scmp.eq.s32.totalorder %s19, 1
      %p177 = por %p175, %p176
      %p178 = scmp.ne.s32.totalorder %s170, %s173
      %p179 = scmp.eq.s32.totalorder %s19, 0
      %p180 = por %p178, %p179
      %p181 = scmp.ne.s32.totalorder %s170, %s173
      %p182 = scmp.eq.s32.totalorder %s24, 1
      %p183 = por %p181, %p182
      %p184 = scmp.ne.s32.totalorder %s173, %s174
      %p185 = scmp.eq.s32.totalorder %s24, 0
      %p186 = por %p184, %p185
      %p187 = scmp.ne.s32.totalorder %s173, %s174
      %p188 = scmp.eq.s32.totalorder %s25, 1
      %p189 = por %p187, %p188
      %p191 = scmp.ne.s32.totalorder %s174, %s190
      %p192 = scmp.eq.s32.totalorder %s25, 0
      %p193 = por %p191, %p192
      %s194 = ssub.s32 %s19, %s26
      %p195 = scmp.eq.s32.totalorder %s194, 0
      %s197 = sadd.s32 %s196, 1
      %s198 = scalar_select %p195, %s196, %s197
      %p201 = pneg %p195
      %p202 = scmp.eq.s32.totalorder %s19, 1
      %p203 = por %p201, %p202
      %p204 = scmp.ne.s32.totalorder %s196, %s199
      %p205 = scmp.eq.s32.totalorder %s19, 0
      %p206 = por %p204, %p205
      %p207 = scmp.ne.s32.totalorder %s196, %s199
      %p208 = scmp.eq.s32.totalorder %s24, 1
      %p209 = por %p207, %p208
      %p210 = scmp.ne.s32.totalorder %s199, %s200
      %p211 = scmp.eq.s32.totalorder %s24, 0
      %p212 = por %p210, %p211
      %p213 = scmp.ne.s32.totalorder %s199, %s200
      %p214 = scmp.eq.s32.totalorder %s25, 1
      %p215 = por %p213, %p214
      %p217 = scmp.ne.s32.totalorder %s200, %s216
      %p218 = scmp.eq.s32.totalorder %s25, 0
      %p219 = por %p217, %p218
      %s220 = ssub.s32 %s19, %s26
      %p221 = scmp.eq.s32.totalorder %s220, 0
      %s223 = sadd.s32 %s222, 1
      %s224 = scalar_select %p221, %s222, %s223
      %p227 = pneg %p221
      %p228 = scmp.eq.s32.totalorder %s19, 1
      %p229 = por %p227, %p228
      %p230 = scmp.ne.s32.totalorder %s222, %s225
      %p231 = scmp.eq.s32.totalorder %s19, 0
      %p232 = por %p230, %p231
      %p233 = scmp.ne.s32.totalorder %s222, %s225
      %p234 = scmp.eq.s32.totalorder %s24, 1
      %p235 = por %p233, %p234
      %p236 = scmp.ne.s32.totalorder %s225, %s226
      %p237 = scmp.eq.s32.totalorder %s24, 0
      %p238 = por %p236, %p237
      %p239 = scmp.ne.s32.totalorder %s225, %s226
      %p240 = scmp.eq.s32.totalorder %s25, 1
      %p241 = por %p239, %p240
      %p243 = scmp.ne.s32.totalorder %s226, %s242
      %p244 = scmp.eq.s32.totalorder %s25, 0
      %p245 = por %p243, %p244
      %s246 = ssub.s32 %s19, %s26
      %p247 = scmp.eq.s32.totalorder %s246, 0
      %s249 = sadd.s32 %s248, 1
      %s250 = scalar_select %p247, %s248, %s249
      %p253 = pneg %p247
      %p254 = scmp.eq.s32.totalorder %s19, 1
      %p255 = por %p253, %p254
      %p256 = scmp.ne.s32.totalorder %s248, %s251
      %p257 = scmp.eq.s32.totalorder %s19, 0
      %p258 = por %p256, %p257
      %p259 = scmp.ne.s32.totalorder %s248, %s251
      %p260 = scmp.eq.s32.totalorder %s24, 1
      %p261 = por %p259, %p260
      %p262 = scmp.ne.s32.totalorder %s251, %s252
      %p263 = scmp.eq.s32.totalorder %s24, 0
      %p264 = por %p262, %p263
      %p265 = scmp.ne.s32.totalorder %s251, %s252
      %p266 = scmp.eq.s32.totalorder %s25, 1
      %p267 = por %p265, %p266
      %p269 = scmp.ne.s32.totalorder %s252, %s268
      %p270 = scmp.eq.s32.totalorder %s25, 0
      %p271 = por %p269, %p270
      %s273 = sadd.s32 %s272, 1
      %p276 = scmp.eq.s32.totalorder %s19, 1
      %p277 = scmp.ne.s32.totalorder %s272, %s274
      %p278 = scmp.eq.s32.totalorder %s19, 0
      %p279 = por %p277, %p278
      %p280 = scmp.ne.s32.totalorder %s272, %s274
      %p281 = scmp.eq.s32.totalorder %s24, 1
      %p282 = por %p280, %p281
      %p283 = scmp.ne.s32.totalorder %s274, %s275
      %p284 = scmp.eq.s32.totalorder %s24, 0
      %p285 = por %p283, %p284
      %p286 = scmp.ne.s32.totalorder %s274, %s275
      %p287 = scmp.eq.s32.totalorder %s25, 1
      %p288 = por %p286, %p287
      %p290 = scmp.ne.s32.totalorder %s275, %s289
      %p291 = scmp.eq.s32.totalorder %s25, 0
      %p292 = por %p290, %p291
      %p293 = scmp.le.s32.totalorder 1, %s19
      %p294 = scmp.lt.s32.totalorder %s19, 3
      %p295 = pnand %p293, %p294
      %p296 = pneg %p295
      // Predicated region
      $region9: #{tpu_custom_call.1} parent=5 // pred_check
        _
      $region10: #{tpu_custom_call.1} parent=5 // pred_check_branch
        %298 = sbr.rel (%p295) target = $region12
      $region11: #{tpu_custom_call.1} parent=5 // pred_region
        %s299 = ssub.s32 %s19, 1
        // Predicated region
        $region13: #{tpu_custom_call.1} parent=11 // pred_check
          %p300 = pneg %p40
        $region14: #{tpu_custom_call.1} parent=11 // pred_check_branch
          %302 = sbr.rel (%p300) target = $region16
        $region15: #{tpu_custom_call.1} parent=11 // pred_region
          %304 = vsyncadd [#allocation4], 0
          %s305 = sshll.u32 %s0, 4
          %s306 = int_to_ptr.hbm [resolvable:$true] %s305
          %s307 = sshll.u32 [#allocation3], 4
          %s308 = int_to_ptr.vmem [resolvable:$true] %s307
          %313 = dma.hbm_to_vmem [thread:$0]  %s306, 256, %s308, [#allocation4], 128, 128, 8
        $region16: #{tpu_custom_call.1} parent=11 // pred_fallthru
          _
        // Predicated region
        $region17: #{tpu_custom_call.1} parent=11 // pred_check
          %p314 = pneg %p61
        $region18: #{tpu_custom_call.1} parent=11 // pred_check_branch
          %316 = sbr.rel (%p314) target = $region20
        $region19: #{tpu_custom_call.1} parent=11 // pred_region
          _
        $region20: #{tpu_custom_call.1} parent=11 // pred_fallthru
          _
        // Predicated region
        $region21: #{tpu_custom_call.1} parent=11 // pred_check
          %p317 = pneg %p82
        $region22: #{tpu_custom_call.1} parent=11 // pred_check_branch
          %319 = sbr.rel (%p317) target = $region24
        $region23: #{tpu_custom_call.1} parent=11 // pred_region
          %321 = vsyncadd [#allocation7], 0
          %s323 = sshll.u32 %s2, 4
          %s324 = int_to_ptr.hbm [resolvable:$true] %s323
          %s325 = sshll.u32 [#allocation6], 4
          %s326 = int_to_ptr.vmem [resolvable:$true] %s325
          %328 = dma.hbm_to_vmem [thread:$0]  %s324, 32, %s326, [#allocation7]
        $region24: #{tpu_custom_call.1} parent=11 // pred_fallthru
          _
      $region12: #{tpu_custom_call.1} parent=5 // pred_fallthru
        _
      %p329 = scmp.lt.s32.totalorder %s19, 2
      // Predicated region
      $region25: #{tpu_custom_call.1} parent=5 // pred_check
        %p330 = pneg %p329
      $region26: #{tpu_custom_call.1} parent=5 // pred_check_branch
        %332 = sbr.rel (%p330) target = $region28
      $region27: #{tpu_custom_call.1} parent=5 // pred_region
        // Predicated region
        $region29: #{tpu_custom_call.1} parent=27 // pred_check
          %p333 = pneg %p102
        $region30: #{tpu_custom_call.1} parent=27 // pred_check_branch
          %335 = sbr.rel (%p333) target = $region32
        $region31: #{tpu_custom_call.1} parent=27 // pred_region
          %p336 = scmp.lt.s32.totalorder %s19, 1
          %s337 = scalar_select %p336, %s19, 1
          %s338 = smul.addr %s337, 4
          %s339 = smul.addr %s338, 4
          %s340 = scalar_lea.vmem %s3, %s339
        $region32: #{tpu_custom_call.1} parent=27 // pred_fallthru
          _
        // Predicated region
        $region33: #{tpu_custom_call.1} parent=27 // pred_check
          %p341 = pneg %p128
        $region34: #{tpu_custom_call.1} parent=27 // pred_check_branch
          %343 = sbr.rel (%p341) target = $region36
        $region35: #{tpu_custom_call.1} parent=27 // pred_region
          %s344 = sand.u32 %s19, 1
          %s345 = scalar_lea.sflag [#allocation4], %s344
          %s346 = sand.u32 %s118, 1
          %s347 = scalar_lea.vmem [#allocation8], %s346
          %349 = vsyncadd %s345, 0
          %s350 = scalar_lea.hbm %s4, %s19
          %s352 = sshll.u32 %s350, 4
          %s353 = int_to_ptr.hbm [resolvable:$true] %s352
          %s354 = sshll.u32 %s347, 4
          %s355 = int_to_ptr.vmem [resolvable:$true] %s354
          %357 = dma.hbm_to_vmem [thread:$0]  %s353, 16, %s355, %s345
        $region36: #{tpu_custom_call.1} parent=27 // pred_fallthru
          _
        // Predicated region
        $region37: #{tpu_custom_call.1} parent=27 // pred_check
          %p358 = pneg %p154
        $region38: #{tpu_custom_call.1} parent=27 // pred_check_branch
          %360 = sbr.rel (%p358) target = $region40
        $region39: #{tpu_custom_call.1} parent=27 // pred_region
          %p361 = scmp.lt.s32.totalorder %s19, 1
          %s362 = scalar_select %p361, %s19, 1
          %s363 = smul.addr %s362, 4
          %s364 = smul.addr %s363, 4
          %s365 = scalar_lea.vmem %s5, %s364
        $region40: #{tpu_custom_call.1} parent=27 // pred_fallthru
          _
        // Predicated region
        $region41: #{tpu_custom_call.1} parent=27 // pred_check
          %p366 = pneg %p180
        $region42: #{tpu_custom_call.1} parent=27 // pred_check_branch
          %368 = sbr.rel (%p366) target = $region44
        $region43: #{tpu_custom_call.1} parent=27 // pred_region
          %p369 = scmp.lt.s32.totalorder %s19, 1
          %s370 = scalar_select %p369, %s19, 1
          %s371 = smul.addr %s370, 4
          %s372 = smul.addr %s371, 4
          %s373 = scalar_lea.vmem %s6, %s372
        $region44: #{tpu_custom_call.1} parent=27 // pred_fallthru
          _
        // Predicated region
        $region45: #{tpu_custom_call.1} parent=27 // pred_check
          %p374 = pneg %p206
        $region46: #{tpu_custom_call.1} parent=27 // pred_check_branch
          %376 = sbr.rel (%p374) target = $region48
        $region47: #{tpu_custom_call.1} parent=27 // pred_region
          %s377 = sand.u32 %s19, 1
          %s378 = scalar_lea.sflag [#allocation4], %s377
          %s379 = sand.u32 %s196, 1
          %s380 = scalar_lea.vmem [#allocation9], %s379
          %382 = vsyncadd %s378, 0
          %s383 = scalar_lea.hbm %s7, %s19
          %s385 = sshll.u32 %s383, 4
          %s386 = int_to_ptr.hbm [resolvable:$true] %s385
          %s387 = sshll.u32 %s380, 4
          %s388 = int_to_ptr.vmem [resolvable:$true] %s387
          %390 = dma.hbm_to_vmem [thread:$0]  %s386, 16, %s388, %s378
        $region48: #{tpu_custom_call.1} parent=27 // pred_fallthru
          _
        // Predicated region
        $region49: #{tpu_custom_call.1} parent=27 // pred_check
          %p391 = pneg %p232
        $region50: #{tpu_custom_call.1} parent=27 // pred_check_branch
          %393 = sbr.rel (%p391) target = $region52
        $region51: #{tpu_custom_call.1} parent=27 // pred_region
          %p394 = scmp.lt.s32.totalorder %s19, 1
          %s395 = scalar_select %p394, %s19, 1
          %s396 = smul.addr %s395, 8
          %s397 = smul.addr %s396, 4
          %s398 = scalar_lea.vmem %s8, %s397
        $region52: #{tpu_custom_call.1} parent=27 // pred_fallthru
          _
        // Predicated region
        $region53: #{tpu_custom_call.1} parent=27 // pred_check
          %p399 = pneg %p258
        $region54: #{tpu_custom_call.1} parent=27 // pred_check_branch
          %401 = sbr.rel (%p399) target = $region56
        $region55: #{tpu_custom_call.1} parent=27 // pred_region
          %p402 = scmp.lt.s32.totalorder %s19, 1
          %s403 = scalar_select %p402, %s19, 1
          %s404 = smul.addr %s403, 8
          %s405 = scalar_lea.vmem %s9, %s404
        $region56: #{tpu_custom_call.1} parent=27 // pred_fallthru
          _
      $region28: #{tpu_custom_call.1} parent=5 // pred_fallthru
        _
      %p406 = scmp.le.s32.totalorder 1, %s19
      %p407 = scmp.lt.s32.totalorder %s19, 3
      %p408 = pnand %p406, %p407
      %p409 = pneg %p408
      // Predicated region
      $region57: #{tpu_custom_call.1} parent=5 // pred_check
        _
      $region58: #{tpu_custom_call.1} parent=5 // pred_check_branch
        %411 = sbr.rel (%p408) target = $region60
      $region59: #{tpu_custom_call.1} parent=5 // pred_region
        %s412 = ssub.s32 %s19, 1
        // Predicated region
        $region61: #{tpu_custom_call.1} parent=59 // pred_check
          %p413 = pneg %p40
        $region62: #{tpu_custom_call.1} parent=59 // pred_check_branch
          %415 = sbr.rel (%p413) target = $region64
        $region63: #{tpu_custom_call.1} parent=59 // pred_region
          %417 = dma.done [#allocation4], 256
        $region64: #{tpu_custom_call.1} parent=59 // pred_fallthru
          _
        // Predicated region
        $region65: #{tpu_custom_call.1} parent=59 // pred_check
          %p418 = pneg %p82
        $region66: #{tpu_custom_call.1} parent=59 // pred_check_branch
          %420 = sbr.rel (%p418) target = $region68
        $region67: #{tpu_custom_call.1} parent=59 // pred_region
          %422 = dma.done [#allocation7], 32
        $region68: #{tpu_custom_call.1} parent=59 // pred_fallthru
          _
        %s423 = sand.u32 %s24, 1
        %s424 = scalar_lea.sflag [#allocation4], %s423
        %s425 = sand.u32 %s121, 1
        %s426 = scalar_lea.vmem [#allocation8], %s425
        // Predicated region
        $region69: #{tpu_custom_call.1} parent=59 // pred_check
          %p427 = pneg %p134
        $region70: #{tpu_custom_call.1} parent=59 // pred_check_branch
          %429 = sbr.rel (%p427) target = $region72
        $region71: #{tpu_custom_call.1} parent=59 // pred_region
          %431 = dma.done %s424, 16
        $region72: #{tpu_custom_call.1} parent=59 // pred_fallthru
          _
        %s432 = sand.u32 %s24, 1
        %s433 = scalar_lea.sflag [#allocation4], %s432
        %s434 = sand.u32 %s199, 1
        %s435 = scalar_lea.vmem [#allocation9], %s434
        // Predicated region
        $region73: #{tpu_custom_call.1} parent=59 // pred_check
          %p436 = pneg %p212
        $region74: #{tpu_custom_call.1} parent=59 // pred_check_branch
          %438 = sbr.rel (%p436) target = $region76
        $region75: #{tpu_custom_call.1} parent=59 // pred_region
          %440 = dma.done %s433, 16
        $region76: #{tpu_custom_call.1} parent=59 // pred_fallthru
          _
        %p441 = pneg %p40
        %p442 = pneg %p37
        %p443 = pneg %p61
        %p444 = pneg %p58
        %p445 = pneg %p82
        %p446 = pneg %p79
        %p447 = scmp.lt.s32.totalorder %s24, 1
        %s448 = scalar_select %p447, %s24, 1
        %s449 = smul.addr %s448, 4
        %s450 = smul.addr %s449, 4
        %s451 = scalar_lea.vmem %s3, %s450
        %p452 = pneg %p108
        %p453 = pneg %p105
        %s454 = sand.u32 %s24, 1
        %s455 = scalar_lea.sflag [#allocation4], %s454
        %s456 = sand.u32 %s121, 1
        %s457 = scalar_lea.vmem [#allocation8], %s456
        %p458 = pneg %p134
        %p459 = pneg %p131
        %p460 = scmp.lt.s32.totalorder %s24, 1
        %s461 = scalar_select %p460, %s24, 1
        %s462 = smul.addr %s461, 4
        %s463 = smul.addr %s462, 4
        %s464 = scalar_lea.vmem %s5, %s463
        %p465 = pneg %p160
        %p466 = pneg %p157
        %p467 = scmp.lt.s32.totalorder %s24, 1
        %s468 = scalar_select %p467, %s24, 1
        %s469 = smul.addr %s468, 4
        %s470 = smul.addr %s469, 4
        %s471 = scalar_lea.vmem %s6, %s470
        %p472 = pneg %p186
        %p473 = pneg %p183
        %s474 = sand.u32 %s24, 1
        %s475 = scalar_lea.sflag [#allocation4], %s474
        %s476 = sand.u32 %s199, 1
        %s477 = scalar_lea.vmem [#allocation9], %s476
        %p478 = pneg %p212
        %p479 = pneg %p209
        %p480 = scmp.lt.s32.totalorder %s24, 1
        %s481 = scalar_select %p480, %s24, 1
        %s482 = smul.addr %s481, 8
        %s483 = smul.addr %s482, 4
        %s484 = scalar_lea.vmem %s8, %s483
        %p485 = pneg %p238
        %p486 = pneg %p235
        %p487 = scmp.lt.s32.totalorder %s24, 1
        %s488 = scalar_select %p487, %s24, 1
        %s489 = smul.addr %s488, 8
        %s490 = scalar_lea.vmem %s9, %s489
        %p491 = pneg %p264
        %p492 = pneg %p261
        %p493 = pneg %p285
        %p494 = pneg %p282
        %p495 = scmp.lt.s32.totalorder %s24, 1
        %s496 = scalar_select %p495, %s24, 1
        %s497 = smul.addr %s496, 4
        %s498 = smul.addr %s497, 4
        %s499 = scalar_lea.vmem %s3, %s498
        %p500 = scmp.lt.s32.totalorder %s24, 1
        %s501 = scalar_select %p500, %s24, 1
        %s502 = smul.addr %s501, 4
        %s503 = smul.addr %s502, 4
        %s504 = scalar_lea.vmem %s5, %s503
        %p505 = scmp.lt.s32.totalorder %s24, 1
        %s506 = scalar_select %p505, %s24, 1
        %s507 = smul.addr %s506, 4
        %s508 = smul.addr %s507, 4
        %s509 = scalar_lea.vmem %s6, %s508
        %p510 = scmp.lt.s32.totalorder %s24, 1
        %s511 = scalar_select %p510, %s24, 1
        %s512 = smul.addr %s511, 8
        %s513 = smul.addr %s512, 4
        %s514 = scalar_lea.vmem %s8, %s513
        %p515 = scmp.lt.s32.totalorder %s24, 1
        %s516 = scalar_select %p515, %s24, 1
        %s517 = smul.addr %s516, 8
        %s518 = scalar_lea.vmem %s9, %s517
        %p520 = scmp.eq.s32.totalorder %s24, 0
        // Predicated region
        $region77: #{tpu_custom_call.1} parent=59 // pred_check
          %p521 = pneg %p520
        $region78: #{tpu_custom_call.1} parent=59 // pred_check_branch
          %523 = sbr.rel (%p521) target = $region80
        $region79: #{tpu_custom_call.1} parent=59 // pred_region
          %v524 = vld [vmem:[#allocation3] sm:$0xff]
          %v525 = vld [vmem:[#allocation3 + $0x8] sm:$0xff]
          %vm526 = vcmask 261120
          %527 = vst.msk [vmem:[#allocation2] sm:$0xff] %vm526, %v524
          %528 = vst.msk [vmem:[#allocation2 + $0x8] sm:$0xff] %vm526, %v525
        $region80: #{tpu_custom_call.1} parent=59 // pred_fallthru
          _
        %v529 = vld [vmem:[%s1] sm:$0x3]
        %v531 = vrot.slane %v529, 1
        %v532 = vld [vmem:[%s518] sm:$0x3f]
        %v533 = vld [vmem:[#allocation2] sm:$0xff]
        %v534 = vld [vmem:[#allocation2 + $0x8] sm:$0xff]
        %v535 = vpack.c.bf16 %v534, %v533
        %v536 = vld [vmem:[%s499] sm:$0xf]
        %v537 = vld [vmem:[%s499 + $0x4] sm:$0xf]
        %v538 = vld [vmem:[%s499 + $0x8] sm:$0xf]
        %v539 = vld [vmem:[%s499 + $0xc] sm:$0xf]
        %v540 = vld [vmem:[%s426] sm:$0x1]
        %v542 = vperm.slane %v540, 0
        %v548 = vunpack.c.l.b16 %v536
        %v549 = vunpack.c.l.b16 %v537
        %v550 = vunpack.c.l.b16 %v538
        %v551 = vunpack.c.l.b16 %v539
        %v552 = vpack.c.b16 %v549, %v548
        %v553 = vpack.c.b16 %v551, %v550
        %vm556 = vcmask 261120
        %v558 = vsel %vm556, %v535, 0
        %560 = vmatpush.bf16.msra.mxu0 0
        %561 = vmatpush.bf16.msra.mxu0 0
        %562 = vmatpush.bf16.msra.mxu0 0
        %563 = vmatpush.bf16.msra.mxu0 0
        %564 = vmatpush.bf16.msra.mxu0 0
        %565 = vmatpush.bf16.msra.mxu0 0
        %566 = vmatpush.bf16.msra.mxu0 %v553
        %567 = vmatpush.bf16.msra.mxu0 %v552
        %568 = vmatmul.bf16.gmra.mxu0 %v558
        %v569 = vpop.f32.mrf.mxu0
        %v570 = vadd.f32 %v542, %v569
        %v571 = vpop.f32.mrf.mxu0
        %v572 = vadd.f32 %v542, %v571
        %573 = vdwg.mxu0
        %v574 = vpack.c.bf16 %v570, %v570
        %v575 = vpack.c.bf16 %v572, %v572
        %v576 = vperm.slane %v529, 0
        %v577 = vperm.slane %v531, 0
        %v581 = vunpack.c.l.b16 %v574
        %v582 = vpack.c.b16 %v581, %v581
        %583 = vrot.lane.b32.xlu0 %v582, 96
        %v584 = vpop.permute.xlu0 %583
        %vm585 = vcmask 64512
        %v587 = vsel %vm585, %v574, 0
        %v590 = vsel %vm585, %v584, 0
        %592 = vmatpush.bf16.xpose.msra.mxu0 0
        %593 = vmatpush.bf16.xpose.msra.mxu0 0
        %594 = vmatpush.bf16.xpose.msra.mxu0 0
        %595 = vmatpush.bf16.xpose.msra.mxu0 0
        %596 = vmatpush.bf16.xpose.msra.mxu0 0
        %597 = vmatpush.bf16.xpose.msra.mxu0 0
        %598 = vmatpush.bf16.xpose.msra.mxu0 0
        %599 = vmatpush.bf16.xpose.msra.mxu0 %v590
        %600 = vmatmul.bf16.gmra.mxu0 %v587
        %v601 = vpop.f32.mrf.mxu0
        %v602 = vadd.f32 %v576, %v601
        %v603 = vpop.f32.mrf.mxu0
        %604 = vdwg.mxu0
        %v606 = vunpack.c.l.b16 %v575
        %v607 = vpack.c.b16 %v606, %v606
        %608 = vrot.lane.b32.xlu0 %v607, 96
        %v609 = vpop.permute.xlu0 %608
        %v611 = vsel %vm585, %v575, 0
        %v614 = vsel %vm585, %v609, 0
        %616 = vmatpush.bf16.xpose.msra.mxu0 0
        %617 = vmatpush.bf16.xpose.msra.mxu0 0
        %618 = vmatpush.bf16.xpose.msra.mxu0 0
        %619 = vmatpush.bf16.xpose.msra.mxu0 0
        %620 = vmatpush.bf16.xpose.msra.mxu0 0
        %621 = vmatpush.bf16.xpose.msra.mxu0 0
        %622 = vmatpush.bf16.xpose.msra.mxu0 0
        %623 = vmatpush.bf16.xpose.msra.mxu0 %v614
        %624 = vmatmul.bf16.gmra.mxu0 %v611
        %v625 = vpop.f32.mrf.mxu0
        %v626 = vadd.f32 %v577, %v625
        %v627 = vpop.f32.mrf.mxu0
        %628 = vdwg.mxu0
        %v629 = vsel %vm585, %v602, -inf
        %630 = vmax.xlane.f32.xlu0 %v629
        %v631 = vpop.xlane.xlu0 %630
        %v632 = vsel %vm585, %v626, -inf
        %633 = vmax.xlane.f32.xlu0 %v632
        %v634 = vpop.xlane.xlu0 %633
        %v635 = vsub.f32 %v602, %v631
        %v636 = vsub.f32 %v626, %v634
        %v637 = vmul.f32 %v635, 1.442695
        %v638 = vpow.pop %v637
        %v639 = vmul.f32 %v636, 1.442695
        %v640 = vpow.pop %v639
        %v641 = vsel %vm585, %v638, 0.0
        %642 = vadd.xlane.f32.xlu0 %v641
        %v643 = vpop.xlane.xlu0 %642
        %v644 = vsel %vm585, %v640, 0.0
        %645 = vadd.xlane.f32.xlu0 %v644
        %v646 = vpop.xlane.xlu0 %645
        %v647 = vrcp.pop %v643
        %v648 = vrcp.pop %v646
        %v649 = vmul.f32 %v638, %v647
        %v650 = vmul.f32 %v640, %v648
        %v651 = vpack.c.bf16 %v649, %v649
        %v652 = vpack.c.bf16 %v650, %v650
        %653 = vrot.lane.b32.xlu0 %v582, 64
        %v654 = vpop.permute.xlu0 %653
        %v656 = vsel %vm585, %v651, 0
        %vm658 = vcmask 1043456
        %v660 = vsel %vm658, %v654, 0
        %662 = vmatpush.bf16.msra.mxu0 0
        %663 = vmatpush.bf16.msra.mxu0 0
        %664 = vmatpush.bf16.msra.mxu0 0
        %665 = vmatpush.bf16.msra.mxu0 0
        %666 = vmatpush.bf16.msra.mxu0 0
        %667 = vmatpush.bf16.msra.mxu0 0
        %668 = vmatpush.bf16.msra.mxu0 0
        %669 = vmatpush.bf16.msra.mxu0 %v660
        %670 = vmatmul.bf16.gmra.mxu0 %v656
        %v671 = vpop.f32.mrf.mxu0
        %v672 = vadd.f32 0.0, %v671
        %v673 = vpop.f32.mrf.mxu0
        %674 = vdwg.mxu0
        %675 = vrot.lane.b32.xlu0 %v607, 64
        %v676 = vpop.permute.xlu0 %675
        %v678 = vsel %vm585, %v652, 0
        %v681 = vsel %vm658, %v676, 0
        %683 = vmatpush.bf16.msra.mxu0 0
        %684 = vmatpush.bf16.msra.mxu0 0
        %685 = vmatpush.bf16.msra.mxu0 0
        %686 = vmatpush.bf16.msra.mxu0 0
        %687 = vmatpush.bf16.msra.mxu0 0
        %688 = vmatpush.bf16.msra.mxu0 0
        %689 = vmatpush.bf16.msra.mxu0 0
        %690 = vmatpush.bf16.msra.mxu0 %v681
        %691 = vmatmul.bf16.gmra.mxu0 %v678
        %v692 = vpop.f32.mrf.mxu0
        %v693 = vadd.f32 0.0, %v692
        %v694 = vpop.f32.mrf.mxu0
        %695 = vdwg.mxu0
        %696 = vrot.lane.b32.xlu0 %v582, 120
        %v697 = vpop.permute.xlu0 %696
        %698 = vrot.lane.b32.xlu0 %v582, 88
        %v699 = vpop.permute.xlu0 %698
        %v701 = vsel %vm585, %v697, 0
        %v704 = vsel %vm585, %v699, 0
        %706 = vmatpush.bf16.xpose.msra.mxu0 0
        %707 = vmatpush.bf16.xpose.msra.mxu0 0
        %708 = vmatpush.bf16.xpose.msra.mxu0 0
        %709 = vmatpush.bf16.xpose.msra.mxu0 0
        %710 = vmatpush.bf16.xpose.msra.mxu0 0
        %711 = vmatpush.bf16.xpose.msra.mxu0 0
        %712 = vmatpush.bf16.xpose.msra.mxu0 0
        %713 = vmatpush.bf16.xpose.msra.mxu0 %v704
        %714 = vmatmul.bf16.gmra.mxu0 %v701
        %v715 = vpop.f32.mrf.mxu0
        %v716 = vadd.f32 %v576, %v715
        %v717 = vpop.f32.mrf.mxu0
        %718 = vdwg.mxu0
        %719 = vrot.lane.b32.xlu0 %v607, 120
        %v720 = vpop.permute.xlu0 %719
        %721 = vrot.lane.b32.xlu0 %v607, 88
        %v722 = vpop.permute.xlu0 %721
        %v724 = vsel %vm585, %v720, 0
        %v727 = vsel %vm585, %v722, 0
        %729 = vmatpush.bf16.xpose.msra.mxu0 0
        %730 = vmatpush.bf16.xpose.msra.mxu0 0
        %731 = vmatpush.bf16.xpose.msra.mxu0 0
        %732 = vmatpush.bf16.xpose.msra.mxu0 0
        %733 = vmatpush.bf16.xpose.msra.mxu0 0
        %734 = vmatpush.bf16.xpose.msra.mxu0 0
        %735 = vmatpush.bf16.xpose.msra.mxu0 0
        %736 = vmatpush.bf16.xpose.msra.mxu0 %v727
        %737 = vmatmul.bf16.gmra.mxu0 %v724
        %v738 = vpop.f32.mrf.mxu0
        %v739 = vadd.f32 %v577, %v738
        %v740 = vpop.f32.mrf.mxu0
        %741 = vdwg.mxu0
        %v742 = vsel %vm585, %v716, -inf
        %743 = vmax.xlane.f32.xlu0 %v742
        %v744 = vpop.xlane.xlu0 %743
        %v745 = vsel %vm585, %v739, -inf
        %746 = vmax.xlane.f32.xlu0 %v745
        %v747 = vpop.xlane.xlu0 %746
        %v748 = vsub.f32 %v716, %v744
        %v749 = vsub.f32 %v739, %v747
        %v750 = vmul.f32 %v748, 1.442695
        %v751 = vpow.pop %v750
        %v752 = vmul.f32 %v749, 1.442695
        %v753 = vpow.pop %v752
        %v754 = vsel %vm585, %v751, 0.0
        %755 = vadd.xlane.f32.xlu0 %v754
        %v756 = vpop.xlane.xlu0 %755
        %v757 = vsel %vm585, %v753, 0.0
        %758 = vadd.xlane.f32.xlu0 %v757
        %v759 = vpop.xlane.xlu0 %758
        %v760 = vrcp.pop %v756
        %v761 = vrcp.pop %v759
        %v762 = vmul.f32 %v751, %v760
        %v763 = vmul.f32 %v753, %v761
        %v764 = vpack.c.bf16 %v762, %v762
        %v765 = vpack.c.bf16 %v763, %v763
        %766 = vrot.lane.b32.xlu0 %v582, 56
        %v767 = vpop.permute.xlu0 %766
        %v769 = vsel %vm585, %v764, 0
        %v772 = vsel %vm658, %v767, 0
        %774 = vmatpush.bf16.msra.mxu0 0
        %775 = vmatpush.bf16.msra.mxu0 0
        %776 = vmatpush.bf16.msra.mxu0 0
        %777 = vmatpush.bf16.msra.mxu0 0
        %778 = vmatpush.bf16.msra.mxu0 0
        %779 = vmatpush.bf16.msra.mxu0 0
        %780 = vmatpush.bf16.msra.mxu0 0
        %781 = vmatpush.bf16.msra.mxu0 %v772
        %782 = vmatmul.bf16.gmra.mxu0 %v769
        %v783 = vpop.f32.mrf.mxu0
        %v784 = vadd.f32 0.0, %v783
        %v785 = vpop.f32.mrf.mxu0
        %786 = vdwg.mxu0
        %787 = vrot.lane.b32.xlu0 %v607, 56
        %v788 = vpop.permute.xlu0 %787
        %v790 = vsel %vm585, %v765, 0
        %v793 = vsel %vm658, %v788, 0
        %795 = vmatpush.bf16.msra.mxu0 0
        %796 = vmatpush.bf16.msra.mxu0 0
        %797 = vmatpush.bf16.msra.mxu0 0
        %798 = vmatpush.bf16.msra.mxu0 0
        %799 = vmatpush.bf16.msra.mxu0 0
        %800 = vmatpush.bf16.msra.mxu0 0
        %801 = vmatpush.bf16.msra.mxu0 0
        %802 = vmatpush.bf16.msra.mxu0 %v793
        %803 = vmatmul.bf16.gmra.mxu0 %v790
        %v804 = vpop.f32.mrf.mxu0
        %v805 = vadd.f32 0.0, %v804
        %v806 = vpop.f32.mrf.mxu0
        %807 = vdwg.mxu0
        %808 = vrot.lane.b32.xlu0 %v582, 112
        %v809 = vpop.permute.xlu0 %808
        %810 = vrot.lane.b32.xlu0 %v582, 80
        %v811 = vpop.permute.xlu0 %810
        %v813 = vsel %vm585, %v809, 0
        %v816 = vsel %vm585, %v811, 0
        %818 = vmatpush.bf16.xpose.msra.mxu0 0
        %819 = vmatpush.bf16.xpose.msra.mxu0 0
        %820 = vmatpush.bf16.xpose.msra.mxu0 0
        %821 = vmatpush.bf16.xpose.msra.mxu0 0
        %822 = vmatpush.bf16.xpose.msra.mxu0 0
        %823 = vmatpush.bf16.xpose.msra.mxu0 0
        %824 = vmatpush.bf16.xpose.msra.mxu0 0
        %825 = vmatpush.bf16.xpose.msra.mxu0 %v816
        %826 = vmatmul.bf16.gmra.mxu0 %v813
        %v827 = vpop.f32.mrf.mxu0
        %v828 = vadd.f32 %v576, %v827
        %v829 = vpop.f32.mrf.mxu0
        %830 = vdwg.mxu0
        %831 = vrot.lane.b32.xlu0 %v607, 112
        %v832 = vpop.permute.xlu0 %831
        %833 = vrot.lane.b32.xlu0 %v607, 80
        %v834 = vpop.permute.xlu0 %833
        %v836 = vsel %vm585, %v832, 0
        %v839 = vsel %vm585, %v834, 0
        %841 = vmatpush.bf16.xpose.msra.mxu0 0
        %842 = vmatpush.bf16.xpose.msra.mxu0 0
        %843 = vmatpush.bf16.xpose.msra.mxu0 0
        %844 = vmatpush.bf16.xpose.msra.mxu0 0
        %845 = vmatpush.bf16.xpose.msra.mxu0 0
        %846 = vmatpush.bf16.xpose.msra.mxu0 0
        %847 = vmatpush.bf16.xpose.msra.mxu0 0
        %848 = vmatpush.bf16.xpose.msra.mxu0 %v839
        %849 = vmatmul.bf16.gmra.mxu0 %v836
        %v850 = vpop.f32.mrf.mxu0
        %v851 = vadd.f32 %v577, %v850
        %v852 = vpop.f32.mrf.mxu0
        %853 = vdwg.mxu0
        %v854 = vsel %vm585, %v828, -inf
        %855 = vmax.xlane.f32.xlu0 %v854
        %v856 = vpop.xlane.xlu0 %855
        %v857 = vsel %vm585, %v851, -inf
        %858 = vmax.xlane.f32.xlu0 %v857
        %v859 = vpop.xlane.xlu0 %858
        %v860 = vsub.f32 %v828, %v856
        %v861 = vsub.f32 %v851, %v859
        %v862 = vmul.f32 %v860, 1.442695
        %v863 = vpow.pop %v862
        %v864 = vmul.f32 %v861, 1.442695
        %v865 = vpow.pop %v864
        %v866 = vsel %vm585, %v863, 0.0
        %867 = vadd.xlane.f32.xlu0 %v866
        %v868 = vpop.xlane.xlu0 %867
        %v869 = vsel %vm585, %v865, 0.0
        %870 = vadd.xlane.f32.xlu0 %v869
        %v871 = vpop.xlane.xlu0 %870
        %v872 = vrcp.pop %v868
        %v873 = vrcp.pop %v871
        %v874 = vmul.f32 %v863, %v872
        %v875 = vmul.f32 %v865, %v873
        %v876 = vpack.c.bf16 %v874, %v874
        %v877 = vpack.c.bf16 %v875, %v875
        %878 = vrot.lane.b32.xlu0 %v582, 48
        %v879 = vpop.permute.xlu0 %878
        %v881 = vsel %vm585, %v876, 0
        %v884 = vsel %vm658, %v879, 0
        %886 = vmatpush.bf16.msra.mxu0 0
        %887 = vmatpush.bf16.msra.mxu0 0
        %888 = vmatpush.bf16.msra.mxu0 0
        %889 = vmatpush.bf16.msra.mxu0 0
        %890 = vmatpush.bf16.msra.mxu0 0
        %891 = vmatpush.bf16.msra.mxu0 0
        %892 = vmatpush.bf16.msra.mxu0 0
        %893 = vmatpush.bf16.msra.mxu0 %v884
        %894 = vmatmul.bf16.gmra.mxu0 %v881
        %v895 = vpop.f32.mrf.mxu0
        %v896 = vadd.f32 0.0, %v895
        %v897 = vpop.f32.mrf.mxu0
        %898 = vdwg.mxu0
        %899 = vrot.lane.b32.xlu0 %v607, 48
        %v900 = vpop.permute.xlu0 %899
        %v902 = vsel %vm585, %v877, 0
        %v905 = vsel %vm658, %v900, 0
        %907 = vmatpush.bf16.msra.mxu0 0
        %908 = vmatpush.bf16.msra.mxu0 0
        %909 = vmatpush.bf16.msra.mxu0 0
        %910 = vmatpush.bf16.msra.mxu0 0
        %911 = vmatpush.bf16.msra.mxu0 0
        %912 = vmatpush.bf16.msra.mxu0 0
        %913 = vmatpush.bf16.msra.mxu0 0
        %914 = vmatpush.bf16.msra.mxu0 %v905
        %915 = vmatmul.bf16.gmra.mxu0 %v902
        %v916 = vpop.f32.mrf.mxu0
        %v917 = vadd.f32 0.0, %v916
        %v918 = vpop.f32.mrf.mxu0
        %919 = vdwg.mxu0
        %920 = vrot.lane.b32.xlu0 %v582, 104
        %v921 = vpop.permute.xlu0 %920
        %922 = vrot.lane.b32.xlu0 %v582, 72
        %v923 = vpop.permute.xlu0 %922
        %v925 = vsel %vm585, %v921, 0
        %v928 = vsel %vm585, %v923, 0
        %930 = vmatpush.bf16.xpose.msra.mxu0 0
        %931 = vmatpush.bf16.xpose.msra.mxu0 0
        %932 = vmatpush.bf16.xpose.msra.mxu0 0
        %933 = vmatpush.bf16.xpose.msra.mxu0 0
        %934 = vmatpush.bf16.xpose.msra.mxu0 0
        %935 = vmatpush.bf16.xpose.msra.mxu0 0
        %936 = vmatpush.bf16.xpose.msra.mxu0 0
        %937 = vmatpush.bf16.xpose.msra.mxu0 %v928
        %938 = vmatmul.bf16.gmra.mxu0 %v925
        %v939 = vpop.f32.mrf.mxu0
        %v940 = vadd.f32 %v576, %v939
        %v941 = vpop.f32.mrf.mxu0
        %942 = vdwg.mxu0
        %943 = vrot.lane.b32.xlu0 %v607, 104
        %v944 = vpop.permute.xlu0 %943
        %945 = vrot.lane.b32.xlu0 %v607, 72
        %v946 = vpop.permute.xlu0 %945
        %v948 = vsel %vm585, %v944, 0
        %v951 = vsel %vm585, %v946, 0
        %953 = vmatpush.bf16.xpose.msra.mxu0 0
        %954 = vmatpush.bf16.xpose.msra.mxu0 0
        %955 = vmatpush.bf16.xpose.msra.mxu0 0
        %956 = vmatpush.bf16.xpose.msra.mxu0 0
        %957 = vmatpush.bf16.xpose.msra.mxu0 0
        %958 = vmatpush.bf16.xpose.msra.mxu0 0
        %959 = vmatpush.bf16.xpose.msra.mxu0 0
        %960 = vmatpush.bf16.xpose.msra.mxu0 %v951
        %961 = vmatmul.bf16.gmra.mxu0 %v948
        %v962 = vpop.f32.mrf.mxu0
        %v963 = vadd.f32 %v577, %v962
        %v964 = vpop.f32.mrf.mxu0
        %965 = vdwg.mxu0
        %v966 = vsel %vm585, %v940, -inf
        %967 = vmax.xlane.f32.xlu0 %v966
        %v968 = vpop.xlane.xlu0 %967
        %v969 = vsel %vm585, %v963, -inf
        %970 = vmax.xlane.f32.xlu0 %v969
        %v971 = vpop.xlane.xlu0 %970
        %v972 = vsub.f32 %v940, %v968
        %v973 = vsub.f32 %v963, %v971
        %v974 = vmul.f32 %v972, 1.442695
        %v975 = vpow.pop %v974
        %v976 = vmul.f32 %v973, 1.442695
        %v977 = vpow.pop %v976
        %v978 = vsel %vm585, %v975, 0.0
        %979 = vadd.xlane.f32.xlu0 %v978
        %v980 = vpop.xlane.xlu0 %979
        %v981 = vsel %vm585, %v977, 0.0
        %982 = vadd.xlane.f32.xlu0 %v981
        %v983 = vpop.xlane.xlu0 %982
        %v984 = vrcp.pop %v980
        %v985 = vrcp.pop %v983
        %v986 = vmul.f32 %v975, %v984
        %v987 = vmul.f32 %v977, %v985
        %v988 = vpack.c.bf16 %v986, %v986
        %v989 = vpack.c.bf16 %v987, %v987
        %990 = vrot.lane.b32.xlu0 %v582, 40
        %v991 = vpop.permute.xlu0 %990
        %v993 = vsel %vm585, %v988, 0
        %v996 = vsel %vm658, %v991, 0
        %998 = vmatpush.bf16.msra.mxu0 0
        %999 = vmatpush.bf16.msra.mxu0 0
        %1000 = vmatpush.bf16.msra.mxu0 0
        %1001 = vmatpush.bf16.msra.mxu0 0
        %1002 = vmatpush.bf16.msra.mxu0 0
        %1003 = vmatpush.bf16.msra.mxu0 0
        %1004 = vmatpush.bf16.msra.mxu0 0
        %1005 = vmatpush.bf16.msra.mxu0 %v996
        %1006 = vmatmul.bf16.gmra.mxu0 %v993
        %v1007 = vpop.f32.mrf.mxu0
        %v1008 = vadd.f32 0.0, %v1007
        %v1009 = vpop.f32.mrf.mxu0
        %1010 = vdwg.mxu0
        %1011 = vrot.lane.b32.xlu0 %v607, 40
        %v1012 = vpop.permute.xlu0 %1011
        %v1014 = vsel %vm585, %v989, 0
        %v1017 = vsel %vm658, %v1012, 0
        %1019 = vmatpush.bf16.msra.mxu0 0
        %1020 = vmatpush.bf16.msra.mxu0 0
        %1021 = vmatpush.bf16.msra.mxu0 0
        %1022 = vmatpush.bf16.msra.mxu0 0
        %1023 = vmatpush.bf16.msra.mxu0 0
        %1024 = vmatpush.bf16.msra.mxu0 0
        %1025 = vmatpush.bf16.msra.mxu0 0
        %1026 = vmatpush.bf16.msra.mxu0 %v1017
        %1027 = vmatmul.bf16.gmra.mxu0 %v1014
        %v1028 = vpop.f32.mrf.mxu0
        %v1029 = vadd.f32 0.0, %v1028
        %v1030 = vpop.f32.mrf.mxu0
        %1031 = vdwg.mxu0
        %1034 = vrot.lane.b32.xlu0 %v784, 8
        %v1035 = vpop.permute.xlu0 %1034
        %1036 = vrot.lane.b32.xlu0 %v805, 8
        %v1037 = vpop.permute.xlu0 %1036
        %1042 = vrot.lane.b32.xlu0 %v896, 16
        %v1043 = vpop.permute.xlu0 %1042
        %1044 = vrot.lane.b32.xlu0 %v917, 16
        %v1045 = vpop.permute.xlu0 %1044
        %1050 = vrot.lane.b32.xlu0 %v1008, 24
        %v1051 = vpop.permute.xlu0 %1050
        %1052 = vrot.lane.b32.xlu0 %v1029, 24
        %v1053 = vpop.permute.xlu0 %1052
        %v1056 = vsel %vm585, %v672, %v1035
        %v1057 = vsel %vm585, %v693, %v1037
        %vm1058 = vcmask 130048
        %v1059 = vsel %vm1058, %v1056, %v1043
        %v1060 = vsel %vm1058, %v1057, %v1045
        %vm1061 = vcmask 195584
        %v1062 = vsel %vm1061, %v1059, %v1051
        %v1063 = vsel %vm1061, %v1060, %v1053
        %v1064 = vpack.c.bf16 %v1063, %v1062
        %v1065 = vld [vmem:[%s504] sm:$0xf]
        %v1066 = vld [vmem:[%s504 + $0x4] sm:$0xf]
        %v1067 = vld [vmem:[%s504 + $0x8] sm:$0xf]
        %v1068 = vld [vmem:[%s504 + $0xc] sm:$0xf]
        %v1069 = vperm.slane %v532, 0
        %v1074 = vunpack.c.l.b16 %v1065
        %v1075 = vunpack.c.l.b16 %v1066
        %v1076 = vunpack.c.l.b16 %v1067
        %v1077 = vunpack.c.l.b16 %v1068
        %v1078 = vpack.c.b16 %v1075, %v1074
        %v1079 = vpack.c.b16 %v1077, %v1076
        %v1083 = vsel %vm556, %v1064, 0
        %1085 = vmatpush.bf16.msra.mxu0 0
        %1086 = vmatpush.bf16.msra.mxu0 0
        %1087 = vmatpush.bf16.msra.mxu0 0
        %1088 = vmatpush.bf16.msra.mxu0 0
        %1089 = vmatpush.bf16.msra.mxu0 0
        %1090 = vmatpush.bf16.msra.mxu0 0
        %1091 = vmatpush.bf16.msra.mxu0 %v1079
        %1092 = vmatpush.bf16.msra.mxu0 %v1078
        %1093 = vmatmul.bf16.gmra.mxu0 %v1083
        %v1094 = vpop.f32.mrf.mxu0
        %v1095 = vadd.f32 %v1069, %v1094
        %v1096 = vpop.f32.mrf.mxu0
        %v1097 = vadd.f32 %v1069, %v1096
        %1098 = vdwg.mxu0
        %v1099 = vadd.f32 %v533, %v1095
        %v1100 = vadd.f32 %v534, %v1097
        %v1101 = vsel %vm556, %v1099, 0.0
        %1102 = vadd.xlane.f32.xlu0 %v1101
        %v1103 = vpop.xlane.xlu0 %1102
        %v1104 = vsel %vm556, %v1100, 0.0
        %1105 = vadd.xlane.f32.xlu0 %v1104
        %v1106 = vpop.xlane.xlu0 %1105
        %v1107 = vrcp.pop 32.0
        %v1108 = vmul.f32 32.0, %v1107
        %v1109 = vsub.f32 1.0, %v1108
        %v1110 = vmul.f32 %v1107, %v1109
        %v1111 = vadd.f32 %v1107, %v1110
        %vm1112 = vweird.f32 %v1107
        %v1113 = vsel %vm1112, %v1107, %v1111
        %v1114 = vmul.f32 %v1103, %v1113
        %v1115 = vmul.f32 %v1106, %v1113
        %v1116 = vsub.f32 %v1099, %v1114
        %v1117 = vsub.f32 %v1100, %v1115
        %v1118 = vmul.f32 %v1116, %v1116
        %v1119 = vmul.f32 %v1117, %v1117
        %v1120 = vsel %vm556, %v1118, 0.0
        %1121 = vadd.xlane.f32.xlu0 %v1120
        %v1122 = vpop.xlane.xlu0 %1121
        %v1123 = vsel %vm556, %v1119, 0.0
        %1124 = vadd.xlane.f32.xlu0 %v1123
        %v1125 = vpop.xlane.xlu0 %1124
        %v1126 = vmul.f32 %v1122, %v1113
        %v1127 = vmul.f32 %v1125, %v1113
        %v1128 = vadd.f32 %v1126, 1e-05
        %v1129 = vadd.f32 %v1127, 1e-05
        %v1130 = vrsqrt.pop %v1128
        %v1131 = vmul.f32 %v1130, %v1128
        %v1132 = vmul.f32 %v1131, %v1130
        %v1133 = vmul.f32 0.5, %v1132
        %v1134 = vsub.f32 1.5, %v1133
        %v1135 = vmul.f32 %v1130, %v1134
        %vm1136 = vweird.f32 %v1128
        %vm1137 = vweird.f32 %v1130
        %vm1138 = vmor %vm1136, %vm1137
        %v1139 = vsel %vm1138, %v1130, %v1135
        %v1140 = vrsqrt.pop %v1129
        %v1141 = vmul.f32 %v1140, %v1129
        %v1142 = vmul.f32 %v1141, %v1140
        %v1143 = vmul.f32 0.5, %v1142
        %v1144 = vsub.f32 1.5, %v1143
        %v1145 = vmul.f32 %v1140, %v1144
        %vm1146 = vweird.f32 %v1129
        %vm1147 = vweird.f32 %v1140
        %vm1148 = vmor %vm1146, %vm1147
        %v1149 = vsel %vm1148, %v1140, %v1145
        %v1150 = vmul.f32 %v1116, %v1139
        %v1151 = vmul.f32 %v1117, %v1149
        %v1152 = vperm.slane %v532, 2
        %v1153 = vmul.f32 %v1150, %v1152
        %v1154 = vmul.f32 %v1151, %v1152
        %v1155 = vperm.slane %v532, 3
        %v1156 = vadd.f32 %v1153, %v1155
        %v1157 = vadd.f32 %v1154, %v1155
        %v1158 = vpack.c.bf16 %v1157, %v1156
        %v1159 = vld [vmem:[%s509] sm:$0xf]
        %v1160 = vld [vmem:[%s509 + $0x4] sm:$0xf]
        %v1161 = vld [vmem:[%s509 + $0x8] sm:$0xf]
        %v1162 = vld [vmem:[%s509 + $0xc] sm:$0xf]
        %v1163 = vld [vmem:[%s435] sm:$0x1]
        %v1165 = vperm.slane %v1163, 0
        %v1171 = vunpack.c.l.b16 %v1159
        %v1172 = vunpack.c.l.b16 %v1160
        %v1173 = vunpack.c.l.b16 %v1161
        %v1174 = vunpack.c.l.b16 %v1162
        %v1175 = vpack.c.b16 %v1172, %v1171
        %v1176 = vpack.c.b16 %v1174, %v1173
        %v1180 = vsel %vm556, %v1158, 0
        %1182 = vmatpush.bf16.msra.mxu0 0
        %1183 = vmatpush.bf16.msra.mxu0 0
        %1184 = vmatpush.bf16.msra.mxu0 0
        %1185 = vmatpush.bf16.msra.mxu0 0
        %1186 = vmatpush.bf16.msra.mxu0 0
        %1187 = vmatpush.bf16.msra.mxu0 0
        %1188 = vmatpush.bf16.msra.mxu0 %v1176
        %1189 = vmatpush.bf16.msra.mxu0 %v1175
        %1190 = vmatmul.bf16.gmra.mxu0 %v1180
        %v1191 = vpop.f32.mrf.mxu0
        %v1192 = vadd.f32 %v1165, %v1191
        %v1193 = vpop.f32.mrf.mxu0
        %v1194 = vadd.f32 %v1165, %v1193
        %1195 = vdwg.mxu0
        %v1196 = vmax.f32 %v1192, 0.0
        %v1197 = vmax.f32 %v1194, 0.0
        %v1198 = vpack.c.bf16 %v1197, %v1196
        %v1199 = vld [vmem:[%s514] sm:$0xf]
        %v1200 = vld [vmem:[%s514 + $0x4] sm:$0xf]
        %v1201 = vld [vmem:[%s514 + $0x8] sm:$0xf]
        %v1202 = vld [vmem:[%s514 + $0xc] sm:$0xf]
        %v1203 = vld [vmem:[%s514 + $0x10] sm:$0xf]
        %v1204 = vld [vmem:[%s514 + $0x14] sm:$0xf]
        %v1205 = vld [vmem:[%s514 + $0x18] sm:$0xf]
        %v1206 = vld [vmem:[%s514 + $0x1c] sm:$0xf]
        %v1207 = vperm.slane %v532, 1
        %v1216 = vunpack.c.l.b16 %v1199
        %v1217 = vunpack.c.l.b16 %v1200
        %v1218 = vunpack.c.l.b16 %v1201
        %v1219 = vunpack.c.l.b16 %v1202
        %v1220 = vunpack.c.l.b16 %v1203
        %v1221 = vunpack.c.l.b16 %v1204
        %v1222 = vunpack.c.l.b16 %v1205
        %v1223 = vunpack.c.l.b16 %v1206
        %v1224 = vpack.c.b16 %v1217, %v1216
        %v1225 = vpack.c.b16 %v1219, %v1218
        %v1226 = vpack.c.b16 %v1221, %v1220
        %v1227 = vpack.c.b16 %v1223, %v1222
        %vm1232 = vcmask 523264
        %v1234 = vsel %vm1232, %v1198, 0
        %1236 = vmatpush.bf16.msra.mxu0 0
        %1237 = vmatpush.bf16.msra.mxu0 0
        %1238 = vmatpush.bf16.msra.mxu0 0
        %1239 = vmatpush.bf16.msra.mxu0 0
        %1240 = vmatpush.bf16.msra.mxu0 %v1227
        %1241 = vmatpush.bf16.msra.mxu0 %v1226
        %1242 = vmatpush.bf16.msra.mxu0 %v1225
        %1243 = vmatpush.bf16.msra.mxu0 %v1224
        %1244 = vmatmul.bf16.gmra.mxu0 %v1234
        %v1245 = vpop.f32.mrf.mxu0
        %v1246 = vadd.f32 %v1207, %v1245
        %v1247 = vpop.f32.mrf.mxu0
        %v1248 = vadd.f32 %v1207, %v1247
        %1249 = vdwg.mxu0
        %v1250 = vadd.f32 %v1156, %v1246
        %v1251 = vadd.f32 %v1157, %v1248
        %v1252 = vsel %vm556, %v1250, 0.0
        %1253 = vadd.xlane.f32.xlu0 %v1252
        %v1254 = vpop.xlane.xlu0 %1253
        %v1255 = vsel %vm556, %v1251, 0.0
        %1256 = vadd.xlane.f32.xlu0 %v1255
        %v1257 = vpop.xlane.xlu0 %1256
        %v1258 = vmul.f32 %v1254, %v1113
        %v1259 = vmul.f32 %v1257, %v1113
        %v1260 = vsub.f32 %v1250, %v1258
        %v1261 = vsub.f32 %v1251, %v1259
        %v1262 = vmul.f32 %v1260, %v1260
        %v1263 = vmul.f32 %v1261, %v1261
        %v1264 = vsel %vm556, %v1262, 0.0
        %1265 = vadd.xlane.f32.xlu0 %v1264
        %v1266 = vpop.xlane.xlu0 %1265
        %v1267 = vsel %vm556, %v1263, 0.0
        %1268 = vadd.xlane.f32.xlu0 %v1267
        %v1269 = vpop.xlane.xlu0 %1268
        %v1270 = vmul.f32 %v1266, %v1113
        %v1271 = vmul.f32 %v1269, %v1113
        %v1272 = vadd.f32 %v1270, 1e-05
        %v1273 = vadd.f32 %v1271, 1e-05
        %v1274 = vrsqrt.pop %v1272
        %v1275 = vmul.f32 %v1274, %v1272
        %v1276 = vmul.f32 %v1275, %v1274
        %v1277 = vmul.f32 0.5, %v1276
        %v1278 = vsub.f32 1.5, %v1277
        %v1279 = vmul.f32 %v1274, %v1278
        %vm1280 = vweird.f32 %v1272
        %vm1281 = vweird.f32 %v1274
        %vm1282 = vmor %vm1280, %vm1281
        %v1283 = vsel %vm1282, %v1274, %v1279
        %v1284 = vrsqrt.pop %v1273
        %v1285 = vmul.f32 %v1284, %v1273
        %v1286 = vmul.f32 %v1285, %v1284
        %v1287 = vmul.f32 0.5, %v1286
        %v1288 = vsub.f32 1.5, %v1287
        %v1289 = vmul.f32 %v1284, %v1288
        %vm1290 = vweird.f32 %v1273
        %vm1291 = vweird.f32 %v1284
        %vm1292 = vmor %vm1290, %vm1291
        %v1293 = vsel %vm1292, %v1284, %v1289
        %v1294 = vmul.f32 %v1260, %v1283
        %v1295 = vmul.f32 %v1261, %v1293
        %v1296 = vperm.slane %v532, 4
        %v1297 = vmul.f32 %v1294, %v1296
        %v1298 = vmul.f32 %v1295, %v1296
        %v1299 = vperm.slane %v532, 5
        %v1300 = vadd.f32 %v1297, %v1299
        %v1301 = vadd.f32 %v1298, %v1299
        %1302 = vst.msk [vmem:[#allocation2] sm:$0xff] %vm556, %v1300
        %1303 = vst.msk [vmem:[#allocation2 + $0x8] sm:$0xff] %vm556, %v1301
        %p1304 = scmp.eq.s32.totalorder %s24, 1
        // Predicated region
        $region81: #{tpu_custom_call.1} parent=59 // pred_check
          %p1305 = pneg %p1304
        $region82: #{tpu_custom_call.1} parent=59 // pred_check_branch
          %1307 = sbr.rel (%p1305) target = $region84
        $region83: #{tpu_custom_call.1} parent=59 // pred_region
          %v1308 = vld [vmem:[#allocation6] sm:$0x3]
          %v1309 = vperm.slane %v1308, 0
          %v1310 = vlaneseq
          %v1311 = vshrl.u32 %v1310, 7
          %1313 = vset.pattern.permute.xlu0 %v1311
          %1314 = vperm.xlu0 %1313, %v1309
          %v1315 = vpop.permute.xlu0 %1314
          %v1316 = vperm.slane %v1308, 1
          %v1317 = vlaneseq
          %v1318 = vshrl.u32 %v1317, 7
          %1320 = vset.pattern.permute.xlu0 %v1318
          %1321 = vperm.xlu0 %1320, %v1316
          %v1322 = vpop.permute.xlu0 %1321
          %v1323 = vmul.f32 %v1300, %v1315
          %v1324 = vmul.f32 %v1301, %v1322
          %v1325 = vsel %vm556, %v1323, 0.0
          %v1326 = vrot.slane %v1325, 4
          %v1327 = vadd.f32 %v1325, %v1326
          %v1328 = vrot.slane %v1327, 2
          %v1329 = vadd.f32 %v1327, %v1328
          %v1330 = vrot.slane %v1329, 1
          %v1331 = vadd.f32 %v1329, %v1330
          %v1332 = vsel %vm556, %v1324, 0.0
          %v1333 = vrot.slane %v1332, 4
          %v1334 = vadd.f32 %v1332, %v1333
          %v1335 = vrot.slane %v1334, 2
          %v1336 = vadd.f32 %v1334, %v1335
          %v1337 = vrot.slane %v1336, 1
          %v1338 = vadd.f32 %v1336, %v1337
          %vm1341 = vcmask 1041409
          %v1342 = vsel %vm1341, %v1338, %v1331
          %vm1344 = vcmask 254976
          %1345 = vst.msk [vmem:[#allocation10] sm:$0x3] %vm1344, %v1342
        $region84: #{tpu_custom_call.1} parent=59 // pred_fallthru
          _
        // Predicated region
        $region85: #{tpu_custom_call.1} parent=59 // pred_check
          %p1346 = pneg %p282
        $region86: #{tpu_custom_call.1} parent=59 // pred_check_branch
          %1348 = sbr.rel (%p1346) target = $region88
        $region87: #{tpu_custom_call.1} parent=59 // pred_region
          %1350 = vsyncadd [#allocation5], 0
          %s1352 = sshll.u32 [#allocation10], 4
          %s1353 = int_to_ptr.vmem [resolvable:$true] %s1352
          %s1354 = sshll.u32 %s10, 4
          %s1355 = int_to_ptr.hbm [resolvable:$true] %s1354
          %1357 = dma.vmem_to_hbm [thread:$0]  %s1353, 32, %s1355, [#allocation5]
        $region88: #{tpu_custom_call.1} parent=59 // pred_fallthru
          _
        // Predicated region
        $region89: #{tpu_custom_call.1} parent=59 // pred_check
          %p1358 = pneg %p282
        $region90: #{tpu_custom_call.1} parent=59 // pred_check_branch
          %1360 = sbr.rel (%p1358) target = $region92
        $region91: #{tpu_custom_call.1} parent=59 // pred_region
          %1362 = dma.done [#allocation5], 32
        $region92: #{tpu_custom_call.1} parent=59 // pred_fallthru
          _
      $region60: #{tpu_custom_call.1} parent=5 // pred_fallthru
        _
      %p1363 = scmp.le.s32.totalorder 2, %s19
      // Predicated region
      $region93: #{tpu_custom_call.1} parent=5 // pred_check
        %p1364 = pneg %p1363
      $region94: #{tpu_custom_call.1} parent=5 // pred_check_branch
        %1366 = sbr.rel (%p1364) target = $region96
      $region95: #{tpu_custom_call.1} parent=5 // pred_region
        %s1367 = ssub.s32 %s19, 2
      $region96: #{tpu_custom_call.1} parent=5 // pred_fallthru
        _
    $region6: #{tpu_custom_call.1} parent=1 // loop_footer
      %s23 = sadd.s32 1, %s19
    $region7: #{tpu_custom_call.1} parent=1 // loop_footer_branch
      %18 = sbr.rel target = $region3
    $region8: #{tpu_custom_call.1} parent=1 // loop_exit
      _
    %1368 = vsyncpa [#allocation4], 1
    %s1369 = scalar_lea.sflag [#allocation4], 1
    %1370 = vsyncpa %s1369, 1
    %1371 = vsyncpa [#allocation7], 1
    %1372 = vsyncpa [#allocation5], 1
    %s1373 = scalar_lea.sflag [#allocation5], 1
    %1374 = vsyncpa %s1373, 1

</llo_original>
